<compile_context>
chip_gen: v5e
topology: v5e:2x2
jax: 0.10.0
libtpu: 0.0.40
codegen_flags: <defaults>
</compile_context>

<pallas_src>
import numpy as np
import jax
import jax.numpy as jnp
from jax import lax
from jax.experimental import pallas as pl
from jax.experimental.pallas import tpu as pltpu


def _round_up(a, m):
    return (a + m - 1) // m * m


# ----------------------------------------------------------------------------
# Hierarchical im2col gather indices (trace-time numpy constant).
#
# Row p = conv3 output position (raster order, p = Pi*h3 + Pj).
# Column layout:  col = (s*4 + r) * (4*c_in) + t*c_in + cin
#   s = conv3 tap / conv2 sub-position   (si*2 + sj)
#   r = conv2 tap / conv1 sub-position   (ri*2 + rj)
#   t = conv1 tap                        (ti*2 + tj)
# so the conv1 output position is (4*Pi + 2*si + ri, 4*Pj + 2*sj + rj) and the
# input tap sits at that position + (ti, tj) in the reflect-padded image.
# ----------------------------------------------------------------------------
def _build_im2col_index(E, h3, c_in):
    Epad = E + 1
    nsq = h3 * h3
    feat1 = 4 * c_in
    idx = np.empty((nsq, 16 * feat1), dtype=np.int32)
    ar = np.arange(c_in, dtype=np.int32)
    for Pi in range(h3):
        for Pj in range(h3):
            p = Pi * h3 + Pj
            for si in range(2):
                for sj in range(2):
                    for ri in range(2):
                        for rj in range(2):
                            blk = (si * 2 + sj) * 4 + (ri * 2 + rj)
                            oh = 4 * Pi + 2 * si + ri
                            ow = 4 * Pj + 2 * sj + rj
                            for ti in range(2):
                                for tj in range(2):
                                    t = ti * 2 + tj
                                    col0 = blk * feat1 + t * c_in
                                    flat0 = ((oh + ti) * Epad + (ow + tj)) * c_in
                                    idx[p, col0:col0 + c_in] = flat0 + ar
    return idx


# ----------------------------------------------------------------------------
# Fused kernel: one batch tile (BT images) per grid step, 6 dense matmuls.
# x_ref is (nsq, BT, 16*4*c_in) with p-major rows so the final flatten is a
# cheap lane-concatenate of contiguous row blocks.
# ----------------------------------------------------------------------------
def _fused_dqn_kernel(x_ref, w1_ref, b1_ref, w2_ref, b2_ref, w3_ref, b3_ref,
                      a1_ref, bf1_ref, wf2_ref, bf2_ref, o_ref):
    f32 = jnp.float32
    nsq, bt, w_in = x_ref.shape

    x2 = x_ref[...].reshape(nsq * bt, w_in)                      # leading-dim collapse (free)

    # conv1 / conv2 / conv3: one matmul each (block-diagonal weights) + bias + ReLU
    y1 = jnp.maximum(
        jnp.dot(x2, w1_ref[...], preferred_element_type=f32) + b1_ref[...], 0.0)
    y2 = jnp.maximum(
        jnp.dot(y1, w2_ref[...], preferred_element_type=f32) + b2_ref[...], 0.0)
    y3 = jnp.maximum(
        jnp.dot(y2, w3_ref[...], preferred_element_type=f32) + b3_ref[...], 0.0)

    # torch.Flatten (NCHW order is folded into a1): put the nsq p-row-blocks
    # side by side along lanes -> (BT, nsq*c3).
    flat = jnp.concatenate([y3[p * bt:(p + 1) * bt, :] for p in range(nsq)], axis=1)

    # fcc1 + ReLU, fcc2
    h1 = jnp.maximum(
        jnp.dot(flat, a1_ref[...], preferred_element_type=f32) + bf1_ref[...], 0.0)
    out = jnp.dot(h1, wf2_ref[...], preferred_element_type=f32) + bf2_ref[...]
    o_ref[...] = out.astype(o_ref.dtype)


# ----------------------------------------------------------------------------
# Forward pass wrapper (mirrors ConvDQNSokoban.forward)
# ----------------------------------------------------------------------------
def conv_dqn_sokoban_forward(params, x_nchw, *, batch_tile=64):
    f32 = jnp.float32
    B, c_in, E, _ = x_nchw.shape
    h2 = (E - 2) // 2 + 1
    h3 = (h2 - 2) // 2 + 1
    nsq = h3 * h3
    c1 = params["conv1_b"].shape[0]
    c2 = params["conv2_b"].shape[0]
    c3 = params["conv3_b"].shape[0]
    fcc_half = params["fcc1_b"].shape[0]
    n_actions = params["fcc2_b"].shape[0]
    feat1 = 4 * c_in
    w_in = 16 * feat1

    # Batch tile: multiple of 8 sublanes, capped at 64 (keeps per-step VMEM
    # ~6 MB even on v5e/v7x defaults).  On v7x large batches give an even grid.
    bt = min(batch_tile, _round_up(B, 8))
    b_pad = _round_up(B, bt)
    grid = b_pad // bt

    # ---- wrapper-side layout plumbing -----------------------------------------------
    # NCHW -> NHWC, reflect-pad bottom/right by 1 (PyTorch k=2 'same', padding_mode='reflect').
    x = jnp.transpose(x_nchw.astype(f32), (0, 2, 3, 1))
    xpad = jnp.pad(x, ((0, 0), (0, 1), (0, 1), (0, 0)), mode="reflect")
    idx = jnp.asarray(_build_im2col_index(E, h3, c_in).reshape(-1))
    xcol = jnp.take(xpad.reshape(B, -1), idx, axis=1).reshape(B, nsq, w_in)
    xcol = jnp.transpose(xcol, (1, 0, 2))                       # (nsq, B, w_in), p-major rows
    if b_pad > B:
        xcol = jnp.pad(xcol, ((0, 0), (0, b_pad - B), (0, 0)))

    # Per-tap conv weights -> (4*C_in, C_out), then block-diagonal copies so each
    # conv layer is a single dense matmul.
    w1_2d = jnp.transpose(params["conv1_w"], (2, 3, 1, 0)).reshape(feat1, c1).astype(f32)
    w2_2d = jnp.transpose(params["conv2_w"], (2, 3, 1, 0)).reshape(4 * c1, c2).astype(f32)
    w3_2d = jnp.transpose(params["conv3_w"], (2, 3, 1, 0)).reshape(4 * c2, c3).astype(f32)
    w1bd = jnp.kron(jnp.eye(16, dtype=f32), w1_2d)              # (16*feat1, 16*c1)
    w2bd = jnp.kron(jnp.eye(4, dtype=f32), w2_2d)               # (16*c1, 4*c2)
    b1r = jnp.tile(params["conv1_b"].astype(f32), 16).reshape(1, 16 * c1)
    b2r = jnp.tile(params["conv2_b"].astype(f32), 4).reshape(1, 4 * c2)
    b3r = params["conv3_b"].astype(f32).reshape(1, c3)

    # fcc1 weight with torch's NCHW flatten folded in: row (p*c3 + co) = fcc1_w[:, co*nsq + p].
    a1 = jnp.transpose(params["fcc1_w"].reshape(fcc_half, c3, nsq), (2, 1, 0))
    a1 = a1.reshape(nsq * c3, fcc_half).astype(f32)
    bf1 = params["fcc1_b"].astype(f32).reshape(1, fcc_half)
    wf2 = params["fcc2_w"].T.astype(f32)                        # (fcc_half, n_actions)
    bf2 = params["fcc2_b"].astype(f32).reshape(1, n_actions)

    # Honest cost estimate (weights counted once, they are grid-resident).
    rows = nsq * bt
    flops = grid * 2 * (rows * w_in * 16 * c1
                        + rows * (16 * c1) * (4 * c2)
                        + rows * (4 * c2) * c3
                        + bt * (nsq * c3) * fcc_half
                        + bt * fcc_half * n_actions)
    weight_bytes = 4 * int(w1bd.size + w2bd.size + w3_2d.size + a1.size + wf2.size
                           + b1r.size + b2r.size + b3r.size + bf1.size + bf2.size)
    io_bytes = 4 * int(xcol.size + b_pad * n_actions)

    out = pl.pallas_call(
        _fused_dqn_kernel,
        out_shape=jax.ShapeDtypeStruct((b_pad, n_actions), f32),
        grid=(grid,),
        in_specs=[
            pl.BlockSpec((nsq, bt, w_in), lambda i: (0, i, 0)),           # batch-tiled input
            pl.BlockSpec((16 * feat1, 16 * c1), lambda i: (0, 0)),        # conv1 block-diag
            pl.BlockSpec((1, 16 * c1), lambda i: (0, 0)),
            pl.BlockSpec((16 * c1, 4 * c2), lambda i: (0, 0)),            # conv2 block-diag
            pl.BlockSpec((1, 4 * c2), lambda i: (0, 0)),
            pl.BlockSpec((4 * c2, c3), lambda i: (0, 0)),                 # conv3
            pl.BlockSpec((1, c3), lambda i: (0, 0)),
            pl.BlockSpec((nsq * c3, fcc_half), lambda i: (0, 0)),         # fcc1 (flatten folded)
            pl.BlockSpec((1, fcc_half), lambda i: (0, 0)),
            pl.BlockSpec((fcc_half, n_actions), lambda i: (0, 0)),        # fcc2
            pl.BlockSpec((1, n_actions), lambda i: (0, 0)),
        ],
        out_specs=pl.BlockSpec((bt, n_actions), lambda i: (i, 0)),
        compiler_params=pltpu.CompilerParams(dimension_semantics=("parallel",)),
        cost_estimate=pl.CostEstimate(flops=flops, transcendentals=0,
                                      bytes_accessed=weight_bytes + io_bytes),
    )(xcol, w1bd, b1r, w2bd, b2r, w3_2d, b3r, a1, bf1, wf2, bf2)
    return out[:B]


# ----------------------------------------------------------------------------
# Parameters (deterministic, PyTorch-default-style uniform init)
# ----------------------------------------------------------------------------
def init_params(key, n_observations, n_actions):
    edge = int(n_observations ** 0.5)
    assert edge >= 4, "The map should be at least 4x4"
    fcc_dim = 16 * (edge // 4) ** 2
    ks = jax.random.split(key, 10)

    def u(k, shape, fan_in):
        bound = 1.0 / (fan_in ** 0.5)
        return jax.random.uniform(k, shape, jnp.float32, -bound, bound)

    return {
        "conv1_w": u(ks[0], (16, 4, 2, 2), 4 * 2 * 2),
        "conv1_b": u(ks[1], (16,), 4 * 2 * 2),
        "conv2_w": u(ks[2], (16, 16, 2, 2), 16 * 2 * 2),
        "conv2_b": u(ks[3], (16,), 16 * 2 * 2),
        "conv3_w": u(ks[4], (16, 16, 2, 2), 16 * 2 * 2),
        "conv3_b": u(ks[5], (16,), 16 * 2 * 2),
        "fcc1_w": u(ks[6], (fcc_dim // 2, fcc_dim), fcc_dim),
        "fcc1_b": u(ks[7], (fcc_dim // 2,), fcc_dim),
        "fcc2_w": u(ks[8], (n_actions, fcc_dim // 2), fcc_dim // 2),
        "fcc2_b": u(ks[9], (n_actions,), fcc_dim // 2),
    }


# ----------------------------------------------------------------------------
# Pure-JAX reference (numerical validation of the fused kernel)
# ----------------------------------------------------------------------------
def _reference_forward(params, x_nchw):
    hi = lax.Precision.HIGHEST
    dn = ("NCHW", "OIHW", "NCHW")
    x = x_nchw.astype(jnp.float32)
    xp = jnp.pad(x, ((0, 0), (0, 0), (0, 1), (0, 1)), mode="reflect")
    y = lax.conv_general_dilated(xp, params["conv1_w"], (1, 1), "VALID",
                                 dimension_numbers=dn, precision=hi)
    y = jnp.maximum(y + params["conv1_b"][None, :, None, None], 0.0)
    y = lax.conv_general_dilated(y, params["conv2_w"], (2, 2), "VALID",
                                 dimension_numbers=dn, precision=hi)
    y = jnp.maximum(y + params["conv2_b"][None, :, None, None], 0.0)
    y = lax.conv_general_dilated(y, params["conv3_w"], (2, 2), "VALID",
                                 dimension_numbers=dn, precision=hi)
    y = jnp.maximum(y + params["conv3_b"][None, :, None, None], 0.0)
    flat = y.reshape(y.shape[0], -1)                       # torch Flatten on NCHW
    h = jnp.maximum(jnp.dot(flat, params["fcc1_w"].T, precision=hi) + params["fcc1_b"], 0.0)
    return jnp.dot(h, params["fcc2_w"].T, precision=hi) + params["fcc2_b"]


if __name__ == "__main__":
    # Module-consistent shapes: 16x16 Sokoban map, 4 input planes, 4 actions, batch of 2.
    n_observations = 16 * 16
    n_actions = 4
    batch = 2
    edge = int(n_observations ** 0.5)

    key = jax.random.PRNGKey(0)
    k_params, k_x = jax.random.split(key)
    params = init_params(k_params, n_observations, n_actions)
    x = jax.random.normal(k_x, (batch, 4, edge, edge), dtype=jnp.float32)

    fwd = jax.jit(conv_dqn_sokoban_forward)
    out = jax.block_until_ready(fwd(params, x))
    assert out.shape == (batch, n_actions), out.shape

    ref = jax.block_until_ready(_reference_forward(params, x))
    max_err = float(jnp.max(jnp.abs(out - ref)))
    assert max_err < 2e-4, f"kernel/reference mismatch: max abs err {max_err}"

    print("KERNEL_OK")
</pallas_src>

<mosaic_0001>
module attributes {stable_mosaic.version = 11 : i64} {
  func.func @_fused_dqn_kernel(%arg0: i32, %arg1: memref<16x8x256xf32, #tpu.memory_space<vmem>>, %arg2: memref<256x256xf32, #tpu.memory_space<vmem>>, %arg3: memref<1x256xf32, #tpu.memory_space<vmem>>, %arg4: memref<256x64xf32, #tpu.memory_space<vmem>>, %arg5: memref<1x64xf32, #tpu.memory_space<vmem>>, %arg6: memref<64x16xf32, #tpu.memory_space<vmem>>, %arg7: memref<1x16xf32, #tpu.memory_space<vmem>>, %arg8: memref<256x128xf32, #tpu.memory_space<vmem>>, %arg9: memref<1x128xf32, #tpu.memory_space<vmem>>, %arg10: memref<128x4xf32, #tpu.memory_space<vmem>>, %arg11: memref<1x4xf32, #tpu.memory_space<vmem>>, %arg12: memref<8x4xf32, #tpu.memory_space<vmem>>) attributes {dimension_semantics = [#tpu.dimension_semantics<parallel>], iteration_bounds = array<i64: 1>, scalar_prefetch = 0 : i64, scratch_operands = 0 : i64, tpu.core_type = #tpu.core_type<tc>, window_params = [{transform_indices = @transform_0, window_bounds = array<i64: 16, 8, 256>}, {pipeline_mode = #tpu.pipeline_mode<synchronous>, transform_indices = @transform_1, window_bounds = array<i64: 256, 256>}, {pipeline_mode = #tpu.pipeline_mode<synchronous>, transform_indices = @transform_2, window_bounds = array<i64: 1, 256>}, {pipeline_mode = #tpu.pipeline_mode<synchronous>, transform_indices = @transform_3, window_bounds = array<i64: 256, 64>}, {pipeline_mode = #tpu.pipeline_mode<synchronous>, transform_indices = @transform_4, window_bounds = array<i64: 1, 64>}, {pipeline_mode = #tpu.pipeline_mode<synchronous>, transform_indices = @transform_5, window_bounds = array<i64: 64, 16>}, {pipeline_mode = #tpu.pipeline_mode<synchronous>, transform_indices = @transform_6, window_bounds = array<i64: 1, 16>}, {pipeline_mode = #tpu.pipeline_mode<synchronous>, transform_indices = @transform_7, window_bounds = array<i64: 256, 128>}, {pipeline_mode = #tpu.pipeline_mode<synchronous>, transform_indices = @transform_8, window_bounds = array<i64: 1, 128>}, {pipeline_mode = #tpu.pipeline_mode<synchronous>, transform_indices = @transform_9, window_bounds = array<i64: 128, 4>}, {pipeline_mode = #tpu.pipeline_mode<synchronous>, transform_indices = @transform_10, window_bounds = array<i64: 1, 4>}, {transform_indices = @transform_11, window_bounds = array<i64: 8, 4>}]} {
    %c0 = arith.constant 0 : index
    %c0_0 = arith.constant 0 : index
    %c0_1 = arith.constant 0 : index
    %0 = vector.load %arg1[%c0, %c0_0, %c0_1] : memref<16x8x256xf32, #tpu.memory_space<vmem>>, vector<16x8x256xf32>
    %1 = vector.shape_cast %0 : vector<16x8x256xf32> to vector<128x256xf32>
    %c0_2 = arith.constant 0 : index
    %c0_3 = arith.constant 0 : index
    %2 = vector.load %arg2[%c0_2, %c0_3] : memref<256x256xf32, #tpu.memory_space<vmem>>, vector<256x256xf32>
    %cst = arith.constant dense<0.000000e+00> : vector<128x256xf32>
    %3 = tpu.matmul %1, %2, %cst {dimension_numbers = #tpu.dot_dimension_numbers<[1], [0], [0], [1], [0, 0, 1, 1], [], []>} : vector<128x256xf32>, vector<256x256xf32>, vector<128x256xf32> -> vector<128x256xf32>
    %c0_4 = arith.constant 0 : index
    %c0_5 = arith.constant 0 : index
    %4 = vector.load %arg3[%c0_4, %c0_5] : memref<1x256xf32, #tpu.memory_space<vmem>>, vector<1x256xf32>
    %5 = vector.broadcast %4 : vector<1x256xf32> to vector<128x256xf32>
    %6 = arith.addf %3, %5 : vector<128x256xf32>
    %cst_6 = arith.constant 0.000000e+00 : f32
    %7 = vector.broadcast %cst_6 : f32 to vector<128x256xf32>
    %8 = arith.maximumf %6, %7 : vector<128x256xf32>
    %c0_7 = arith.constant 0 : index
    %c0_8 = arith.constant 0 : index
    %9 = vector.load %arg4[%c0_7, %c0_8] : memref<256x64xf32, #tpu.memory_space<vmem>>, vector<256x64xf32>
    %cst_9 = arith.constant dense<0.000000e+00> : vector<128x64xf32>
    %10 = tpu.matmul %8, %9, %cst_9 {dimension_numbers = #tpu.dot_dimension_numbers<[1], [0], [0], [1], [0, 0, 1, 1], [], []>} : vector<128x256xf32>, vector<256x64xf32>, vector<128x64xf32> -> vector<128x64xf32>
    %c0_10 = arith.constant 0 : index
    %c0_11 = arith.constant 0 : index
    %11 = vector.load %arg5[%c0_10, %c0_11] : memref<1x64xf32, #tpu.memory_space<vmem>>, vector<1x64xf32>
    %12 = vector.broadcast %11 : vector<1x64xf32> to vector<128x64xf32>
    %13 = arith.addf %10, %12 : vector<128x64xf32>
    %cst_12 = arith.constant 0.000000e+00 : f32
    %14 = vector.broadcast %cst_12 : f32 to vector<128x64xf32>
    %15 = arith.maximumf %13, %14 : vector<128x64xf32>
    %c0_13 = arith.constant 0 : index
    %c0_14 = arith.constant 0 : index
    %16 = vector.load %arg6[%c0_13, %c0_14] : memref<64x16xf32, #tpu.memory_space<vmem>>, vector<64x16xf32>
    %cst_15 = arith.constant dense<0.000000e+00> : vector<128x16xf32>
    %17 = tpu.matmul %15, %16, %cst_15 {dimension_numbers = #tpu.dot_dimension_numbers<[1], [0], [0], [1], [0, 0, 1, 1], [], []>} : vector<128x64xf32>, vector<64x16xf32>, vector<128x16xf32> -> vector<128x16xf32>
    %c0_16 = arith.constant 0 : index
    %c0_17 = arith.constant 0 : index
    %18 = vector.load %arg7[%c0_16, %c0_17] : memref<1x16xf32, #tpu.memory_space<vmem>>, vector<1x16xf32>
    %19 = vector.broadcast %18 : vector<1x16xf32> to vector<128x16xf32>
    %20 = arith.addf %17, %19 : vector<128x16xf32>
    %cst_18 = arith.constant 0.000000e+00 : f32
    %21 = vector.broadcast %cst_18 : f32 to vector<128x16xf32>
    %22 = arith.maximumf %20, %21 : vector<128x16xf32>
    %23 = vector.extract_strided_slice %22 {offsets = [0, 0], sizes = [8, 16], strides = [1, 1]} : vector<128x16xf32> to vector<8x16xf32>
    %24 = vector.extract_strided_slice %22 {offsets = [8, 0], sizes = [8, 16], strides = [1, 1]} : vector<128x16xf32> to vector<8x16xf32>
    %25 = vector.extract_strided_slice %22 {offsets = [16, 0], sizes = [8, 16], strides = [1, 1]} : vector<128x16xf32> to vector<8x16xf32>
    %26 = vector.extract_strided_slice %22 {offsets = [24, 0], sizes = [8, 16], strides = [1, 1]} : vector<128x16xf32> to vector<8x16xf32>
    %27 = vector.extract_strided_slice %22 {offsets = [32, 0], sizes = [8, 16], strides = [1, 1]} : vector<128x16xf32> to vector<8x16xf32>
    %28 = vector.extract_strided_slice %22 {offsets = [40, 0], sizes = [8, 16], strides = [1, 1]} : vector<128x16xf32> to vector<8x16xf32>
    %29 = vector.extract_strided_slice %22 {offsets = [48, 0], sizes = [8, 16], strides = [1, 1]} : vector<128x16xf32> to vector<8x16xf32>
    %30 = vector.extract_strided_slice %22 {offsets = [56, 0], sizes = [8, 16], strides = [1, 1]} : vector<128x16xf32> to vector<8x16xf32>
    %31 = vector.extract_strided_slice %22 {offsets = [64, 0], sizes = [8, 16], strides = [1, 1]} : vector<128x16xf32> to vector<8x16xf32>
    %32 = vector.extract_strided_slice %22 {offsets = [72, 0], sizes = [8, 16], strides = [1, 1]} : vector<128x16xf32> to vector<8x16xf32>
    %33 = vector.extract_strided_slice %22 {offsets = [80, 0], sizes = [8, 16], strides = [1, 1]} : vector<128x16xf32> to vector<8x16xf32>
    %34 = vector.extract_strided_slice %22 {offsets = [88, 0], sizes = [8, 16], strides = [1, 1]} : vector<128x16xf32> to vector<8x16xf32>
    %35 = vector.extract_strided_slice %22 {offsets = [96, 0], sizes = [8, 16], strides = [1, 1]} : vector<128x16xf32> to vector<8x16xf32>
    %36 = vector.extract_strided_slice %22 {offsets = [104, 0], sizes = [8, 16], strides = [1, 1]} : vector<128x16xf32> to vector<8x16xf32>
    %37 = vector.extract_strided_slice %22 {offsets = [112, 0], sizes = [8, 16], strides = [1, 1]} : vector<128x16xf32> to vector<8x16xf32>
    %38 = vector.extract_strided_slice %22 {offsets = [120, 0], sizes = [8, 16], strides = [1, 1]} : vector<128x16xf32> to vector<8x16xf32>
    %39 = tpu.concatenate %23, %24, %25, %26, %27, %28, %29, %30, %31, %32, %33, %34, %35, %36, %37, %38 in 1 : vector<8x16xf32>, vector<8x16xf32>, vector<8x16xf32>, vector<8x16xf32>, vector<8x16xf32>, vector<8x16xf32>, vector<8x16xf32>, vector<8x16xf32>, vector<8x16xf32>, vector<8x16xf32>, vector<8x16xf32>, vector<8x16xf32>, vector<8x16xf32>, vector<8x16xf32>, vector<8x16xf32>, vector<8x16xf32> -> vector<8x256xf32>
    %c0_19 = arith.constant 0 : index
    %c0_20 = arith.constant 0 : index
    %40 = vector.load %arg8[%c0_19, %c0_20] : memref<256x128xf32, #tpu.memory_space<vmem>>, vector<256x128xf32>
    %cst_21 = arith.constant dense<0.000000e+00> : vector<8x128xf32>
    %41 = tpu.matmul %39, %40, %cst_21 {dimension_numbers = #tpu.dot_dimension_numbers<[1], [0], [0], [1], [0, 0, 1, 1], [], []>} : vector<8x256xf32>, vector<256x128xf32>, vector<8x128xf32> -> vector<8x128xf32>
    %c0_22 = arith.constant 0 : index
    %c0_23 = arith.constant 0 : index
    %42 = vector.load %arg9[%c0_22, %c0_23] : memref<1x128xf32, #tpu.memory_space<vmem>>, vector<1x128xf32>
    %43 = vector.broadcast %42 : vector<1x128xf32> to vector<8x128xf32>
    %44 = arith.addf %41, %43 : vector<8x128xf32>
    %cst_24 = arith.constant 0.000000e+00 : f32
    %45 = vector.broadcast %cst_24 : f32 to vector<8x128xf32>
    %46 = arith.maximumf %44, %45 : vector<8x128xf32>
    %c0_25 = arith.constant 0 : index
    %c0_26 = arith.constant 0 : index
    %47 = vector.load %arg10[%c0_25, %c0_26] : memref<128x4xf32, #tpu.memory_space<vmem>>, vector<128x4xf32>
    %cst_27 = arith.constant dense<0.000000e+00> : vector<8x4xf32>
    %48 = tpu.matmul %46, %47, %cst_27 {dimension_numbers = #tpu.dot_dimension_numbers<[1], [0], [0], [1], [0, 0, 1, 1], [], []>} : vector<8x128xf32>, vector<128x4xf32>, vector<8x4xf32> -> vector<8x4xf32>
    %c0_28 = arith.constant 0 : index
    %c0_29 = arith.constant 0 : index
    %49 = vector.load %arg11[%c0_28, %c0_29] : memref<1x4xf32, #tpu.memory_space<vmem>>, vector<1x4xf32>
    %50 = vector.broadcast %49 : vector<1x4xf32> to vector<8x4xf32>
    %51 = arith.addf %48, %50 : vector<8x4xf32>
    %c0_30 = arith.constant 0 : index
    %c0_31 = arith.constant 0 : index
    %52 = vector.load %arg12[%c0_30, %c0_31] : memref<8x4xf32, #tpu.memory_space<vmem>>, vector<8x4xf32>
    tpu.vector_store %arg12[%c0_30, %c0_31], %51 {strides = array<i32>} : memref<8x4xf32, #tpu.memory_space<vmem>>, vector<8x4xf32>,
    return
  }
  func.func @transform_0(%arg0: i32) -> (i32, i32, i32) {
    %c0_i32 = arith.constant 0 : i32
    %c0_i32_0 = arith.constant 0 : i32
    %c0_i32_1 = arith.constant 0 : i32
    return %c0_i32, %arg0, %c0_i32_0 : i32, i32, i32
  }
  func.func @transform_1(%arg0: i32) -> (i32, i32) {
    %c0_i32 = arith.constant 0 : i32
    %c0_i32_0 = arith.constant 0 : i32
    %c0_i32_1 = arith.constant 0 : i32
    return %c0_i32, %c0_i32_0 : i32, i32
  }
  func.func @transform_2(%arg0: i32) -> (i32, i32) {
    %c0_i32 = arith.constant 0 : i32
    %c0_i32_0 = arith.constant 0 : i32
    %c0_i32_1 = arith.constant 0 : i32
    return %c0_i32, %c0_i32_0 : i32, i32
  }
  func.func @transform_3(%arg0: i32) -> (i32, i32) {
    %c0_i32 = arith.constant 0 : i32
    %c0_i32_0 = arith.constant 0 : i32
    %c0_i32_1 = arith.constant 0 : i32
    return %c0_i32, %c0_i32_0 : i32, i32
  }
  func.func @transform_4(%arg0: i32) -> (i32, i32) {
    %c0_i32 = arith.constant 0 : i32
    %c0_i32_0 = arith.constant 0 : i32
    %c0_i32_1 = arith.constant 0 : i32
    return %c0_i32, %c0_i32_0 : i32, i32
  }
  func.func @transform_5(%arg0: i32) -> (i32, i32) {
    %c0_i32 = arith.constant 0 : i32
    %c0_i32_0 = arith.constant 0 : i32
    %c0_i32_1 = arith.constant 0 : i32
    return %c0_i32, %c0_i32_0 : i32, i32
  }
  func.func @transform_6(%arg0: i32) -> (i32, i32) {
    %c0_i32 = arith.constant 0 : i32
    %c0_i32_0 = arith.constant 0 : i32
    %c0_i32_1 = arith.constant 0 : i32
    return %c0_i32, %c0_i32_0 : i32, i32
  }
  func.func @transform_7(%arg0: i32) -> (i32, i32) {
    %c0_i32 = arith.constant 0 : i32
    %c0_i32_0 = arith.constant 0 : i32
    %c0_i32_1 = arith.constant 0 : i32
    return %c0_i32, %c0_i32_0 : i32, i32
  }
  func.func @transform_8(%arg0: i32) -> (i32, i32) {
    %c0_i32 = arith.constant 0 : i32
    %c0_i32_0 = arith.constant 0 : i32
    %c0_i32_1 = arith.constant 0 : i32
    return %c0_i32, %c0_i32_0 : i32, i32
  }
  func.func @transform_9(%arg0: i32) -> (i32, i32) {
    %c0_i32 = arith.constant 0 : i32
    %c0_i32_0 = arith.constant 0 : i32
    %c0_i32_1 = arith.constant 0 : i32
    return %c0_i32, %c0_i32_0 : i32, i32
  }
  func.func @transform_10(%arg0: i32) -> (i32, i32) {
    %c0_i32 = arith.constant 0 : i32
    %c0_i32_0 = arith.constant 0 : i32
    %c0_i32_1 = arith.constant 0 : i32
    return %c0_i32, %c0_i32_0 : i32, i32
  }
  func.func @transform_11(%arg0: i32) -> (i32, i32) {
    %c0_i32 = arith.constant 0 : i32
    %c0_i32_0 = arith.constant 0 : i32
    return %arg0, %c0_i32 : i32, i32
  }
}

</mosaic_0001>

<llo_original>
// kernel: mul.18
$region0: #{mul.18}
  %s0 = inlined_call_operand.vmem [shape: f32[2,2,16,16], index: 0, kind: input, shape index: {}]
  %s1 = inlined_call_operand.vmem [shape: f32[64,16], index: 1, kind: output, shape index: {}]
  $region1: #{mul.18} parent=0
    #allocation0 [shape = 'u8[131072]{0}', space=vmem, size = 0x20000, scoped, tag = 'scoped mem for input reshape']
    %s3 = ssub.s32 4, 1
    %s4 = scalar_lea.vmem %s0, 62
    %v5 = vld [vmem:[%s4] sm:%s3]
    %s6 = scalar_lea.vmem [#allocation0], 248
    %7 = vst [vmem:[%s6] sm:%s3] %v5
    %s8 = scalar_lea.vmem %s0, 60
    %v9 = vld [vmem:[%s8] sm:%s3]
    %s10 = scalar_lea.vmem [#allocation0], 240
    %11 = vst [vmem:[%s10] sm:%s3] %v9
    %s12 = scalar_lea.vmem %s0, 58
    %v13 = vld [vmem:[%s12] sm:%s3]
    %s14 = scalar_lea.vmem [#allocation0], 232
    %15 = vst [vmem:[%s14] sm:%s3] %v13
    %s16 = scalar_lea.vmem %s0, 56
    %v17 = vld [vmem:[%s16] sm:%s3]
    %s18 = scalar_lea.vmem [#allocation0], 224
    %19 = vst [vmem:[%s18] sm:%s3] %v17
    %s20 = scalar_lea.vmem %s0, 54
    %v21 = vld [vmem:[%s20] sm:%s3]
    %s22 = scalar_lea.vmem [#allocation0], 216
    %23 = vst [vmem:[%s22] sm:%s3] %v21
    %s24 = scalar_lea.vmem %s0, 52
    %v25 = vld [vmem:[%s24] sm:%s3]
    %s26 = scalar_lea.vmem [#allocation0], 208
    %27 = vst [vmem:[%s26] sm:%s3] %v25
    %s28 = scalar_lea.vmem %s0, 50
    %v29 = vld [vmem:[%s28] sm:%s3]
    %s30 = scalar_lea.vmem [#allocation0], 200
    %31 = vst [vmem:[%s30] sm:%s3] %v29
    %s32 = scalar_lea.vmem %s0, 48
    %v33 = vld [vmem:[%s32] sm:%s3]
    %s34 = scalar_lea.vmem [#allocation0], 192
    %35 = vst [vmem:[%s34] sm:%s3] %v33
    %s36 = scalar_lea.vmem %s0, 46
    %v37 = vld [vmem:[%s36] sm:%s3]
    %s38 = scalar_lea.vmem [#allocation0], 184
    %39 = vst [vmem:[%s38] sm:%s3] %v37
    %s40 = scalar_lea.vmem %s0, 44
    %v41 = vld [vmem:[%s40] sm:%s3]
    %s42 = scalar_lea.vmem [#allocation0], 176
    %43 = vst [vmem:[%s42] sm:%s3] %v41
    %s44 = scalar_lea.vmem %s0, 42
    %v45 = vld [vmem:[%s44] sm:%s3]
    %s46 = scalar_lea.vmem [#allocation0], 168
    %47 = vst [vmem:[%s46] sm:%s3] %v45
    %s48 = scalar_lea.vmem %s0, 40
    %v49 = vld [vmem:[%s48] sm:%s3]
    %s50 = scalar_lea.vmem [#allocation0], 160
    %51 = vst [vmem:[%s50] sm:%s3] %v49
    %s52 = scalar_lea.vmem %s0, 38
    %v53 = vld [vmem:[%s52] sm:%s3]
    %s54 = scalar_lea.vmem [#allocation0], 152
    %55 = vst [vmem:[%s54] sm:%s3] %v53
    %s56 = scalar_lea.vmem %s0, 36
    %v57 = vld [vmem:[%s56] sm:%s3]
    %s58 = scalar_lea.vmem [#allocation0], 144
    %59 = vst [vmem:[%s58] sm:%s3] %v57
    %s60 = scalar_lea.vmem %s0, 34
    %v61 = vld [vmem:[%s60] sm:%s3]
    %s62 = scalar_lea.vmem [#allocation0], 136
    %63 = vst [vmem:[%s62] sm:%s3] %v61
    %s64 = scalar_lea.vmem %s0, 32
    %v65 = vld [vmem:[%s64] sm:%s3]
    %s66 = scalar_lea.vmem [#allocation0], 128
    %67 = vst [vmem:[%s66] sm:%s3] %v65
    %s68 = scalar_lea.vmem %s0, 30
    %v69 = vld [vmem:[%s68] sm:%s3]
    %s70 = scalar_lea.vmem [#allocation0], 120
    %71 = vst [vmem:[%s70] sm:%s3] %v69
    %s72 = scalar_lea.vmem %s0, 28
    %v73 = vld [vmem:[%s72] sm:%s3]
    %s74 = scalar_lea.vmem [#allocation0], 112
    %75 = vst [vmem:[%s74] sm:%s3] %v73
    %s76 = scalar_lea.vmem %s0, 26
    %v77 = vld [vmem:[%s76] sm:%s3]
    %s78 = scalar_lea.vmem [#allocation0], 104
    %79 = vst [vmem:[%s78] sm:%s3] %v77
    %s80 = scalar_lea.vmem %s0, 24
    %v81 = vld [vmem:[%s80] sm:%s3]
    %s82 = scalar_lea.vmem [#allocation0], 96
    %83 = vst [vmem:[%s82] sm:%s3] %v81
    %s84 = scalar_lea.vmem %s0, 22
    %v85 = vld [vmem:[%s84] sm:%s3]
    %s86 = scalar_lea.vmem [#allocation0], 88
    %87 = vst [vmem:[%s86] sm:%s3] %v85
    %s88 = scalar_lea.vmem %s0, 20
    %v89 = vld [vmem:[%s88] sm:%s3]
    %s90 = scalar_lea.vmem [#allocation0], 80
    %91 = vst [vmem:[%s90] sm:%s3] %v89
    %s92 = scalar_lea.vmem %s0, 18
    %v93 = vld [vmem:[%s92] sm:%s3]
    %s94 = scalar_lea.vmem [#allocation0], 72
    %95 = vst [vmem:[%s94] sm:%s3] %v93
    %s96 = scalar_lea.vmem %s0, 16
    %v97 = vld [vmem:[%s96] sm:%s3]
    %s98 = scalar_lea.vmem [#allocation0], 64
    %99 = vst [vmem:[%s98] sm:%s3] %v97
    %s100 = scalar_lea.vmem %s0, 14
    %v101 = vld [vmem:[%s100] sm:%s3]
    %s102 = scalar_lea.vmem [#allocation0], 56
    %103 = vst [vmem:[%s102] sm:%s3] %v101
    %s104 = scalar_lea.vmem %s0, 12
    %v105 = vld [vmem:[%s104] sm:%s3]
    %s106 = scalar_lea.vmem [#allocation0], 48
    %107 = vst [vmem:[%s106] sm:%s3] %v105
    %s108 = scalar_lea.vmem %s0, 10
    %v109 = vld [vmem:[%s108] sm:%s3]
    %s110 = scalar_lea.vmem [#allocation0], 40
    %111 = vst [vmem:[%s110] sm:%s3] %v109
    %s112 = scalar_lea.vmem %s0, 8
    %v113 = vld [vmem:[%s112] sm:%s3]
    %s114 = scalar_lea.vmem [#allocation0], 32
    %115 = vst [vmem:[%s114] sm:%s3] %v113
    %s116 = scalar_lea.vmem %s0, 6
    %v117 = vld [vmem:[%s116] sm:%s3]
    %s118 = scalar_lea.vmem [#allocation0], 24
    %119 = vst [vmem:[%s118] sm:%s3] %v117
    %s120 = scalar_lea.vmem %s0, 4
    %v121 = vld [vmem:[%s120] sm:%s3]
    %s122 = scalar_lea.vmem [#allocation0], 16
    %123 = vst [vmem:[%s122] sm:%s3] %v121
    %s124 = scalar_lea.vmem %s0, 2
    %v125 = vld [vmem:[%s124] sm:%s3]
    %s126 = scalar_lea.vmem [#allocation0], 8
    %127 = vst [vmem:[%s126] sm:%s3] %v125
    %v128 = vld [vmem:[%s0] sm:%s3]
    %129 = vst [vmem:[#allocation0] sm:%s3] %v128
    %s130 = smov 3
    %v131 = vld [vmem:[#allocation0] ss:$16 sm:%s130]
    %s132 = smov 12
    %v133 = vld [vmem:[#allocation0] ss:$16 sm:%s132]
    %vm134 = vcmask 1043458
    %v135 = vsel %vm134, %v133, %v131
    %s136 = smov 48
    %v137 = vld [vmem:[#allocation0] ss:$16 sm:%s136]
    %vm138 = vcmask 1045508
    %v139 = vsel %vm138, %v137, %v135
    %s140 = smov 192
    %v141 = vld [vmem:[#allocation0] ss:$16 sm:%s140]
    %vm142 = vcmask 1047558
    %v143 = vsel %vm142, %v141, %v139
    %vm144 = vcmask 130048
    %145 = vst.msk [vmem:[%s1] sm:$0xff] %vm144, %v143
    %s146 = scalar_lea.vmem [#allocation0], 128
    %s147 = smov 3
    %v148 = vld [vmem:[%s146] ss:$16 sm:%s147]
    %s149 = scalar_lea.vmem [#allocation0], 128
    %s150 = smov 12
    %v151 = vld [vmem:[%s149] ss:$16 sm:%s150]
    %vm152 = vcmask 1043458
    %v153 = vsel %vm152, %v151, %v148
    %s154 = scalar_lea.vmem [#allocation0], 128
    %s155 = smov 48
    %v156 = vld [vmem:[%s154] ss:$16 sm:%s155]
    %vm157 = vcmask 1045508
    %v158 = vsel %vm157, %v156, %v153
    %s159 = scalar_lea.vmem [#allocation0], 128
    %s160 = smov 192
    %v161 = vld [vmem:[%s159] ss:$16 sm:%s160]
    %vm162 = vcmask 1047558
    %v163 = vsel %vm162, %v161, %v158
    %vm164 = vcmask 130048
    %s165 = scalar_lea.vmem %s1, 8
    %166 = vst.msk [vmem:[%s165] sm:$0xff] %vm164, %v163
    %s167 = scalar_lea.vmem [#allocation0], 9
    %s168 = smov 3
    %v169 = vld [vmem:[%s167] ss:$16 sm:%s168]
    %s170 = scalar_lea.vmem [#allocation0], 9
    %s171 = smov 12
    %v172 = vld [vmem:[%s170] ss:$16 sm:%s171]
    %vm173 = vcmask 1043458
    %v174 = vsel %vm173, %v172, %v169
    %s175 = scalar_lea.vmem [#allocation0], 9
    %s176 = smov 48
    %v177 = vld [vmem:[%s175] ss:$16 sm:%s176]
    %vm178 = vcmask 1045508
    %v179 = vsel %vm178, %v177, %v174
    %s180 = scalar_lea.vmem [#allocation0], 9
    %s181 = smov 192
    %v182 = vld [vmem:[%s180] ss:$16 sm:%s181]
    %vm183 = vcmask 1047558
    %v184 = vsel %vm183, %v182, %v179
    %185 = vrot.lane.b32.xlu0 %v184, 48
    %v186 = vpop.permute.xlu0 %185
    %vm187 = vcmask 523648
    %188 = vst.msk [vmem:[%s1] sm:$0xff] %vm187, %v186
    %s189 = scalar_lea.vmem [#allocation0], 137
    %s190 = smov 3
    %v191 = vld [vmem:[%s189] ss:$16 sm:%s190]
    %s192 = scalar_lea.vmem [#allocation0], 137
    %s193 = smov 12
    %v194 = vld [vmem:[%s192] ss:$16 sm:%s193]
    %vm195 = vcmask 1043458
    %v196 = vsel %vm195, %v194, %v191
    %s197 = scalar_lea.vmem [#allocation0], 137
    %s198 = smov 48
    %v199 = vld [vmem:[%s197] ss:$16 sm:%s198]
    %vm200 = vcmask 1045508
    %v201 = vsel %vm200, %v199, %v196
    %s202 = scalar_lea.vmem [#allocation0], 137
    %s203 = smov 192
    %v204 = vld [vmem:[%s202] ss:$16 sm:%s203]
    %vm205 = vcmask 1047558
    %v206 = vsel %vm205, %v204, %v201
    %207 = vrot.lane.b32.xlu0 %v206, 48
    %v208 = vpop.permute.xlu0 %207
    %vm209 = vcmask 523648
    %s210 = scalar_lea.vmem %s1, 8
    %211 = vst.msk [vmem:[%s210] sm:$0xff] %vm209, %v208
    %s212 = scalar_lea.vmem [#allocation0], 8
    %s213 = smov 3
    %v214 = vld [vmem:[%s212] ss:$16 sm:%s213]
    %s215 = scalar_lea.vmem [#allocation0], 8
    %s216 = smov 12
    %v217 = vld [vmem:[%s215] ss:$16 sm:%s216]
    %vm218 = vcmask 1043458
    %v219 = vsel %vm218, %v217, %v214
    %s220 = scalar_lea.vmem [#allocation0], 8
    %s221 = smov 48
    %v222 = vld [vmem:[%s220] ss:$16 sm:%s221]
    %vm223 = vcmask 1045508
    %v224 = vsel %vm223, %v222, %v219
    %s225 = scalar_lea.vmem [#allocation0], 8
    %s226 = smov 192
    %v227 = vld [vmem:[%s225] ss:$16 sm:%s226]
    %vm228 = vcmask 1047558
    %v229 = vsel %vm228, %v227, %v224
    %230 = vrot.lane.b32.xlu0 %v229, 32
    %v231 = vpop.permute.xlu0 %230
    %vm232 = vcmask 392448
    %233 = vst.msk [vmem:[%s1] sm:$0xff] %vm232, %v231
    %s234 = scalar_lea.vmem [#allocation0], 136
    %s235 = smov 3
    %v236 = vld [vmem:[%s234] ss:$16 sm:%s235]
    %s237 = scalar_lea.vmem [#allocation0], 136
    %s238 = smov 12
    %v239 = vld [vmem:[%s237] ss:$16 sm:%s238]
    %vm240 = vcmask 1043458
    %v241 = vsel %vm240, %v239, %v236
    %s242 = scalar_lea.vmem [#allocation0], 136
    %s243 = smov 48
    %v244 = vld [vmem:[%s242] ss:$16 sm:%s243]
    %vm245 = vcmask 1045508
    %v246 = vsel %vm245, %v244, %v241
    %s247 = scalar_lea.vmem [#allocation0], 136
    %s248 = smov 192
    %v249 = vld [vmem:[%s247] ss:$16 sm:%s248]
    %vm250 = vcmask 1047558
    %v251 = vsel %vm250, %v249, %v246
    %252 = vrot.lane.b32.xlu0 %v251, 32
    %v253 = vpop.permute.xlu0 %252
    %vm254 = vcmask 392448
    %s255 = scalar_lea.vmem %s1, 8
    %256 = vst.msk [vmem:[%s255] sm:$0xff] %vm254, %v253
    %s257 = scalar_lea.vmem [#allocation0], 1
    %s258 = smov 3
    %v259 = vld [vmem:[%s257] ss:$16 sm:%s258]
    %s260 = scalar_lea.vmem [#allocation0], 1
    %s261 = smov 12
    %v262 = vld [vmem:[%s260] ss:$16 sm:%s261]
    %vm263 = vcmask 1043458
    %v264 = vsel %vm263, %v262, %v259
    %s265 = scalar_lea.vmem [#allocation0], 1
    %s266 = smov 48
    %v267 = vld [vmem:[%s265] ss:$16 sm:%s266]
    %vm268 = vcmask 1045508
    %v269 = vsel %vm268, %v267, %v264
    %s270 = scalar_lea.vmem [#allocation0], 1
    %s271 = smov 192
    %v272 = vld [vmem:[%s270] ss:$16 sm:%s271]
    %vm273 = vcmask 1047558
    %v274 = vsel %vm273, %v272, %v269
    %275 = vrot.lane.b32.xlu0 %v274, 16
    %v276 = vpop.permute.xlu0 %275
    %vm277 = vcmask 261248
    %278 = vst.msk [vmem:[%s1] sm:$0xff] %vm277, %v276
    %s279 = scalar_lea.vmem [#allocation0], 129
    %s280 = smov 3
    %v281 = vld [vmem:[%s279] ss:$16 sm:%s280]
    %s282 = scalar_lea.vmem [#allocation0], 129
    %s283 = smov 12
    %v284 = vld [vmem:[%s282] ss:$16 sm:%s283]
    %vm285 = vcmask 1043458
    %v286 = vsel %vm285, %v284, %v281
    %s287 = scalar_lea.vmem [#allocation0], 129
    %s288 = smov 48
    %v289 = vld [vmem:[%s287] ss:$16 sm:%s288]
    %vm290 = vcmask 1045508
    %v291 = vsel %vm290, %v289, %v286
    %s292 = scalar_lea.vmem [#allocation0], 129
    %s293 = smov 192
    %v294 = vld [vmem:[%s292] ss:$16 sm:%s293]
    %vm295 = vcmask 1047558
    %v296 = vsel %vm295, %v294, %v291
    %297 = vrot.lane.b32.xlu0 %v296, 16
    %v298 = vpop.permute.xlu0 %297
    %vm299 = vcmask 261248
    %s300 = scalar_lea.vmem %s1, 8
    %301 = vst.msk [vmem:[%s300] sm:$0xff] %vm299, %v298

// kernel: tile.13
$region0: #{tile.13}
  #allocation0 [shape = 's32[1]{0}', space=sflag, size = 0x4, scoped, tag = 'scoped memory for tile.13']
  %s0 = inlined_call_operand.vmem [shape: f32[16], index: 0, kind: input, shape index: {}]
  %s1 = inlined_call_operand.vmem [shape: f32[16,16], index: 1, kind: output, shape index: {}]
  // Predicated region
  $region2: #{tile.13} parent=0 // pred_check
    _
  $region3: #{tile.13} parent=0 // pred_check_branch
    %3 = sbr.rel (0) target = $region5
  $region4: #{tile.13} parent=0 // pred_region
    _
  $region5: #{tile.13} parent=0 // pred_fallthru
    _
  %v4 = vld [vmem:[%s0] ss:$0 sm:$0xff]
  %5 = vst [vmem:[%s1] sm:$0xff] %v4
  %s6 = scalar_lea.vmem %s1, 8
  %7 = vst [vmem:[%s6] sm:$0xff] %v4

// kernel: tile.14
$region0: #{tile.14}
  %s0 = inlined_call_operand.vmem [shape: f32[16,16], index: 0, kind: input, shape index: {}]
  %s1 = inlined_call_operand.vmem [shape: f32[1,256], index: 1, kind: output, shape index: {}]
  $region1: #{tile.14} parent=0
    #allocation0 [shape = 'u8[8192]{0}', space=vmem, size = 0x2000, scoped, tag = 'scoped mem for output reshape']
    %s2 = smov 3
    %v3 = vld [vmem:[%s0] ss:$8 sm:%s2]
    %vm4 = vcmask 130048
    %5 = vst.msk [vmem:[#allocation0] ss:$8 sm:$0x3] %vm4, %v3
    %s6 = scalar_lea.vmem %s0, 7
    %s7 = smov 3
    %v8 = vld [vmem:[%s6] ss:$8 sm:%s7]
    %9 = vrot.lane.b32.xlu0 %v8, 112
    %v10 = vpop.permute.xlu0 %9
    %vm11 = vcmask 1048448
    %12 = vst.msk [vmem:[#allocation0] ss:$8 sm:$0x3] %vm11, %v10
    %s13 = scalar_lea.vmem %s0, 6
    %s14 = smov 3
    %v15 = vld [vmem:[%s13] ss:$8 sm:%s14]
    %16 = vrot.lane.b32.xlu0 %v15, 96
    %v17 = vpop.permute.xlu0 %16
    %vm18 = vcmask 917248
    %19 = vst.msk [vmem:[#allocation0] ss:$8 sm:$0x3] %vm18, %v17
    %s20 = scalar_lea.vmem %s0, 5
    %s21 = smov 3
    %v22 = vld [vmem:[%s20] ss:$8 sm:%s21]
    %23 = vrot.lane.b32.xlu0 %v22, 80
    %v24 = vpop.permute.xlu0 %23
    %vm25 = vcmask 786048
    %26 = vst.msk [vmem:[#allocation0] ss:$8 sm:$0x3] %vm25, %v24
    %s27 = scalar_lea.vmem %s0, 4
    %s28 = smov 3
    %v29 = vld [vmem:[%s27] ss:$8 sm:%s28]
    %30 = vrot.lane.b32.xlu0 %v29, 64
    %v31 = vpop.permute.xlu0 %30
    %vm32 = vcmask 654848
    %33 = vst.msk [vmem:[#allocation0] ss:$8 sm:$0x3] %vm32, %v31
    %s34 = scalar_lea.vmem %s0, 3
    %s35 = smov 3
    %v36 = vld [vmem:[%s34] ss:$8 sm:%s35]
    %37 = vrot.lane.b32.xlu0 %v36, 48
    %v38 = vpop.permute.xlu0 %37
    %vm39 = vcmask 523648
    %40 = vst.msk [vmem:[#allocation0] ss:$8 sm:$0x3] %vm39, %v38
    %s41 = scalar_lea.vmem %s0, 2
    %s42 = smov 3
    %v43 = vld [vmem:[%s41] ss:$8 sm:%s42]
    %44 = vrot.lane.b32.xlu0 %v43, 32
    %v45 = vpop.permute.xlu0 %44
    %vm46 = vcmask 392448
    %47 = vst.msk [vmem:[#allocation0] ss:$8 sm:$0x3] %vm46, %v45
    %s48 = scalar_lea.vmem %s0, 1
    %s49 = smov 3
    %v50 = vld [vmem:[%s48] ss:$8 sm:%s49]
    %51 = vrot.lane.b32.xlu0 %v50, 16
    %v52 = vpop.permute.xlu0 %51
    %vm53 = vcmask 261248
    %54 = vst.msk [vmem:[#allocation0] ss:$8 sm:$0x3] %vm53, %v52
    %s56 = ssub.s32 2, 1
    %v57 = vld [vmem:[#allocation0] sm:%s56]
    %s59 = ssub.s32 2, 1
    %60 = vst [vmem:[%s1] sm:%s59] %v57
    %s61 = scalar_lea.vmem [#allocation0], 8
    %v62 = vld [vmem:[%s61] sm:%s56]
    %s64 = ssub.s32 2, 1
    %s65 = scalar_lea.vmem %s1, 1
    %66 = vst [vmem:[%s65] sm:%s64] %v62

// kernel: tile.18
$region0: #{tile.18}
  #allocation0 [shape = 's32[1]{0}', space=sflag, size = 0x4, scoped, tag = 'scoped memory for tile.18']
  %s0 = inlined_call_operand.vmem [shape: f32[16], index: 0, kind: input, shape index: {}]
  %s1 = inlined_call_operand.vmem [shape: f32[4,16], index: 1, kind: output, shape index: {}]
  // Predicated region
  $region2: #{tile.18} parent=0 // pred_check
    _
  $region3: #{tile.18} parent=0 // pred_check_branch
    %3 = sbr.rel (0) target = $region5
  $region4: #{tile.18} parent=0 // pred_region
    _
  $region5: #{tile.18} parent=0 // pred_fallthru
    _
  %v4 = vld [vmem:[%s0] ss:$0 sm:$0xff]
  %5 = vst [vmem:[%s1] sm:$0xf] %v4

// kernel: tile.19
$region0: #{tile.19}
  %s0 = inlined_call_operand.vmem [shape: f32[4,16], index: 0, kind: input, shape index: {}]
  %s1 = inlined_call_operand.vmem [shape: f32[1,64], index: 1, kind: output, shape index: {}]
  $region1: #{tile.19} parent=0
    #allocation0 [shape = 'u8[4096]{0}', space=vmem, size = 0x1000, scoped, tag = 'scoped mem for output reshape']
    #allocation1 [shape = 'u8[4096]{0}', space=vmem, size = 0x1000, scoped, tag = 'scoped mem for input reshape']
    %s3 = ssub.s32 16, 1
    %v4 = vld [vmem:[%s0] sm:%s3]
    %5 = vst [vmem:[#allocation1] sm:%s3] %v4
    %v6 = vld [vmem:[#allocation1] sm:$0x1]
    %vm7 = vcmask 130048
    %8 = vst.msk [vmem:[#allocation0] sm:$0x1] %vm7, %v6
    %s9 = scalar_lea.vmem [#allocation1], 3
    %v10 = vld [vmem:[%s9] sm:$0x1]
    %11 = vrot.lane.b32.xlu0 %v10, 48
    %v12 = vpop.permute.xlu0 %11
    %vm13 = vcmask 523648
    %14 = vst.msk [vmem:[#allocation0] sm:$0x1] %vm13, %v12
    %s15 = scalar_lea.vmem [#allocation1], 2
    %v16 = vld [vmem:[%s15] sm:$0x1]
    %17 = vrot.lane.b32.xlu0 %v16, 32
    %v18 = vpop.permute.xlu0 %17
    %vm19 = vcmask 392448
    %20 = vst.msk [vmem:[#allocation0] sm:$0x1] %vm19, %v18
    %s21 = scalar_lea.vmem [#allocation1], 1
    %v22 = vld [vmem:[%s21] sm:$0x1]
    %23 = vrot.lane.b32.xlu0 %v22, 16
    %v24 = vpop.permute.xlu0 %23
    %vm25 = vcmask 261248
    %26 = vst.msk [vmem:[#allocation0] sm:$0x1] %vm25, %v24
    %s28 = ssub.s32 2, 1
    %v29 = vld [vmem:[#allocation0] sm:%s28]
    %s31 = ssub.s32 2, 1
    %32 = vst [vmem:[%s1] sm:%s31] %v29

// kernel: conv_dqn_sokoban_forward.1
$region0: #{conv_dqn_sokoban_forward.1}
  #allocation0 [shape = 'u32[]', space=smem, size = 0x4, offset = 0x4, fixed_abs, tag = 'smem constant byte address 0x4 - core index']
  #allocation1 [shape = 'u32[72,128]{1,0:T(1,128)}', space=vmem, size = 0x9000, scoped, tag = 'internal scratch']
  %s0 = inlined_call_operand.vmem [shape: f32[16,8,256], index: 0, kind: input, shape index: {}]
  %s1 = inlined_call_operand.vmem [shape: f32[256,256], index: 1, kind: input, shape index: {}]
  %s2 = inlined_call_operand.vmem [shape: f32[1,256], index: 2, kind: input, shape index: {}]
  %s3 = inlined_call_operand.vmem [shape: f32[256,64], index: 3, kind: input, shape index: {}]
  %s4 = inlined_call_operand.vmem [shape: f32[1,64], index: 4, kind: input, shape index: {}]
  %s5 = inlined_call_operand.vmem [shape: f32[64,16], index: 5, kind: input, shape index: {}]
  %s6 = inlined_call_operand.vmem [shape: f32[1,16], index: 6, kind: input, shape index: {}]
  %s7 = inlined_call_operand.vmem [shape: f32[256,128], index: 7, kind: input, shape index: {}]
  %s8 = inlined_call_operand.vmem [shape: f32[1,128], index: 8, kind: input, shape index: {}]
  %s9 = inlined_call_operand.vmem [shape: f32[128,4], index: 9, kind: input, shape index: {}]
  %s10 = inlined_call_operand.vmem [shape: f32[1,4], index: 10, kind: input, shape index: {}]
  %s11 = inlined_call_operand.vmem [shape: f32[8,4], index: 11, kind: output, shape index: {}]
  %s12 = sld [smem:[#allocation0]]
  $region54: #{conv_dqn_sokoban_forward.1} parent=0
    _
  %s14 = ssub.s32 1, %s12
  %s15 = scalar_select 0, %s14, %s12
  // Predicated region
  $region2: #{conv_dqn_sokoban_forward.1} parent=0 // pred_check
    _
  $region3: #{conv_dqn_sokoban_forward.1} parent=0 // pred_check_branch
    %17 = sbr.rel (0) target = $region5
  $region4: #{conv_dqn_sokoban_forward.1} parent=0 // pred_region
    _
  $region5: #{conv_dqn_sokoban_forward.1} parent=0 // pred_fallthru
    _
  // Predicated region
  $region6: #{conv_dqn_sokoban_forward.1} parent=0 // pred_check
    _
  $region7: #{conv_dqn_sokoban_forward.1} parent=0 // pred_check_branch
    %19 = sbr.rel (0) target = $region9
  $region8: #{conv_dqn_sokoban_forward.1} parent=0 // pred_region
    _
  $region9: #{conv_dqn_sokoban_forward.1} parent=0 // pred_fallthru
    _
  // Predicated region
  $region10: #{conv_dqn_sokoban_forward.1} parent=0 // pred_check
    _
  $region11: #{conv_dqn_sokoban_forward.1} parent=0 // pred_check_branch
    %21 = sbr.rel (0) target = $region13
  $region12: #{conv_dqn_sokoban_forward.1} parent=0 // pred_region
    _
  $region13: #{conv_dqn_sokoban_forward.1} parent=0 // pred_fallthru
    _
  // Predicated region
  $region14: #{conv_dqn_sokoban_forward.1} parent=0 // pred_check
    _
  $region15: #{conv_dqn_sokoban_forward.1} parent=0 // pred_check_branch
    %23 = sbr.rel (0) target = $region17
  $region16: #{conv_dqn_sokoban_forward.1} parent=0 // pred_region
    _
  $region17: #{conv_dqn_sokoban_forward.1} parent=0 // pred_fallthru
    _
  // Predicated region
  $region18: #{conv_dqn_sokoban_forward.1} parent=0 // pred_check
    _
  $region19: #{conv_dqn_sokoban_forward.1} parent=0 // pred_check_branch
    %25 = sbr.rel (0) target = $region21
  $region20: #{conv_dqn_sokoban_forward.1} parent=0 // pred_region
    _
  $region21: #{conv_dqn_sokoban_forward.1} parent=0 // pred_fallthru
    _
  // Predicated region
  $region22: #{conv_dqn_sokoban_forward.1} parent=0 // pred_check
    _
  $region23: #{conv_dqn_sokoban_forward.1} parent=0 // pred_check_branch
    %27 = sbr.rel (0) target = $region25
  $region24: #{conv_dqn_sokoban_forward.1} parent=0 // pred_region
    _
  $region25: #{conv_dqn_sokoban_forward.1} parent=0 // pred_fallthru
    _
  // Predicated region
  $region26: #{conv_dqn_sokoban_forward.1} parent=0 // pred_check
    _
  $region27: #{conv_dqn_sokoban_forward.1} parent=0 // pred_check_branch
    %29 = sbr.rel (0) target = $region29
  $region28: #{conv_dqn_sokoban_forward.1} parent=0 // pred_region
    _
  $region29: #{conv_dqn_sokoban_forward.1} parent=0 // pred_fallthru
    _
  // Predicated region
  $region30: #{conv_dqn_sokoban_forward.1} parent=0 // pred_check
    _
  $region31: #{conv_dqn_sokoban_forward.1} parent=0 // pred_check_branch
    %31 = sbr.rel (0) target = $region33
  $region32: #{conv_dqn_sokoban_forward.1} parent=0 // pred_region
    _
  $region33: #{conv_dqn_sokoban_forward.1} parent=0 // pred_fallthru
    _
  // Predicated region
  $region34: #{conv_dqn_sokoban_forward.1} parent=0 // pred_check
    _
  $region35: #{conv_dqn_sokoban_forward.1} parent=0 // pred_check_branch
    %33 = sbr.rel (0) target = $region37
  $region36: #{conv_dqn_sokoban_forward.1} parent=0 // pred_region
    _
  $region37: #{conv_dqn_sokoban_forward.1} parent=0 // pred_fallthru
    _
  // Predicated region
  $region38: #{conv_dqn_sokoban_forward.1} parent=0 // pred_check
    _
  $region39: #{conv_dqn_sokoban_forward.1} parent=0 // pred_check_branch
    %35 = sbr.rel (0) target = $region41
  $region40: #{conv_dqn_sokoban_forward.1} parent=0 // pred_region
    _
  $region41: #{conv_dqn_sokoban_forward.1} parent=0 // pred_fallthru
    _
  // Predicated region
  $region42: #{conv_dqn_sokoban_forward.1} parent=0 // pred_check
    _
  $region43: #{conv_dqn_sokoban_forward.1} parent=0 // pred_check_branch
    %37 = sbr.rel (0) target = $region45
  $region44: #{conv_dqn_sokoban_forward.1} parent=0 // pred_region
    _
  $region45: #{conv_dqn_sokoban_forward.1} parent=0 // pred_fallthru
    _
  %v38 = vld [vmem:[%s0] sm:$0xff]
  %v39 = vld [vmem:[%s0 + $0x8] sm:$0xff]
  %v40 = vld [vmem:[%s0 + $0x10] sm:$0xff]
  %v41 = vld [vmem:[%s0 + $0x18] sm:$0xff]
  %v42 = vld [vmem:[%s0 + $0x20] sm:$0xff]
  %v43 = vld [vmem:[%s0 + $0x28] sm:$0xff]
  %v44 = vld [vmem:[%s0 + $0x30] sm:$0xff]
  %v45 = vld [vmem:[%s0 + $0x38] sm:$0xff]
  %v46 = vld [vmem:[%s0 + $0x40] sm:$0xff]
  %v47 = vld [vmem:[%s0 + $0x48] sm:$0xff]
  %v48 = vld [vmem:[%s0 + $0x50] sm:$0xff]
  %v49 = vld [vmem:[%s0 + $0x58] sm:$0xff]
  %v50 = vld [vmem:[%s0 + $0x60] sm:$0xff]
  %v51 = vld [vmem:[%s0 + $0x68] sm:$0xff]
  %v52 = vld [vmem:[%s0 + $0x70] sm:$0xff]
  %v53 = vld [vmem:[%s0 + $0x78] sm:$0xff]
  %v54 = vld [vmem:[%s0 + $0x80] sm:$0xff]
  %v55 = vld [vmem:[%s0 + $0x88] sm:$0xff]
  %v56 = vld [vmem:[%s0 + $0x90] sm:$0xff]
  %v57 = vld [vmem:[%s0 + $0x98] sm:$0xff]
  %v58 = vld [vmem:[%s0 + $0xa0] sm:$0xff]
  %v59 = vld [vmem:[%s0 + $0xa8] sm:$0xff]
  %v60 = vld [vmem:[%s0 + $0xb0] sm:$0xff]
  %v61 = vld [vmem:[%s0 + $0xb8] sm:$0xff]
  %v62 = vld [vmem:[%s0 + $0xc0] sm:$0xff]
  %v63 = vld [vmem:[%s0 + $0xc8] sm:$0xff]
  %v64 = vld [vmem:[%s0 + $0xd0] sm:$0xff]
  %v65 = vld [vmem:[%s0 + $0xd8] sm:$0xff]
  %v66 = vld [vmem:[%s0 + $0xe0] sm:$0xff]
  %v67 = vld [vmem:[%s0 + $0xe8] sm:$0xff]
  %v68 = vld [vmem:[%s0 + $0xf0] sm:$0xff]
  %v69 = vld [vmem:[%s0 + $0xf8] sm:$0xff]
  %v70 = vld [vmem:[%s1] sm:$0xff]
  %v71 = vld [vmem:[%s1 + $0x8] sm:$0xff]
  %v72 = vld [vmem:[%s1 + $0x10] sm:$0xff]
  %v73 = vld [vmem:[%s1 + $0x18] sm:$0xff]
  %v74 = vld [vmem:[%s1 + $0x20] sm:$0xff]
  %v75 = vld [vmem:[%s1 + $0x28] sm:$0xff]
  %v76 = vld [vmem:[%s1 + $0x30] sm:$0xff]
  %v77 = vld [vmem:[%s1 + $0x38] sm:$0xff]
  %v78 = vld [vmem:[%s1 + $0x40] sm:$0xff]
  %v79 = vld [vmem:[%s1 + $0x48] sm:$0xff]
  %v80 = vld [vmem:[%s1 + $0x50] sm:$0xff]
  %v81 = vld [vmem:[%s1 + $0x58] sm:$0xff]
  %v82 = vld [vmem:[%s1 + $0x60] sm:$0xff]
  %v83 = vld [vmem:[%s1 + $0x68] sm:$0xff]
  %v84 = vld [vmem:[%s1 + $0x70] sm:$0xff]
  %v85 = vld [vmem:[%s1 + $0x78] sm:$0xff]
  %v86 = vld [vmem:[%s1 + $0x80] sm:$0xff]
  %v87 = vld [vmem:[%s1 + $0x88] sm:$0xff]
  %v88 = vld [vmem:[%s1 + $0x90] sm:$0xff]
  %v89 = vld [vmem:[%s1 + $0x98] sm:$0xff]
  %v90 = vld [vmem:[%s1 + $0xa0] sm:$0xff]
  %v91 = vld [vmem:[%s1 + $0xa8] sm:$0xff]
  %v92 = vld [vmem:[%s1 + $0xb0] sm:$0xff]
  %v93 = vld [vmem:[%s1 + $0xb8] sm:$0xff]
  %v94 = vld [vmem:[%s1 + $0xc0] sm:$0xff]
  %v95 = vld [vmem:[%s1 + $0xc8] sm:$0xff]
  %v96 = vld [vmem:[%s1 + $0xd0] sm:$0xff]
  %v97 = vld [vmem:[%s1 + $0xd8] sm:$0xff]
  %v98 = vld [vmem:[%s1 + $0xe0] sm:$0xff]
  %v99 = vld [vmem:[%s1 + $0xe8] sm:$0xff]
  %v100 = vld [vmem:[%s1 + $0xf0] sm:$0xff]
  %v101 = vld [vmem:[%s1 + $0xf8] sm:$0xff]
  %v102 = vld [vmem:[%s1 + $0x100] sm:$0xff]
  %v103 = vld [vmem:[%s1 + $0x108] sm:$0xff]
  %v104 = vld [vmem:[%s1 + $0x110] sm:$0xff]
  %v105 = vld [vmem:[%s1 + $0x118] sm:$0xff]
  %v106 = vld [vmem:[%s1 + $0x120] sm:$0xff]
  %v107 = vld [vmem:[%s1 + $0x128] sm:$0xff]
  %v108 = vld [vmem:[%s1 + $0x130] sm:$0xff]
  %v109 = vld [vmem:[%s1 + $0x138] sm:$0xff]
  %v110 = vld [vmem:[%s1 + $0x140] sm:$0xff]
  %v111 = vld [vmem:[%s1 + $0x148] sm:$0xff]
  %v112 = vld [vmem:[%s1 + $0x150] sm:$0xff]
  %v113 = vld [vmem:[%s1 + $0x158] sm:$0xff]
  %v114 = vld [vmem:[%s1 + $0x160] sm:$0xff]
  %v115 = vld [vmem:[%s1 + $0x168] sm:$0xff]
  %v116 = vld [vmem:[%s1 + $0x170] sm:$0xff]
  %v117 = vld [vmem:[%s1 + $0x178] sm:$0xff]
  %v118 = vld [vmem:[%s1 + $0x180] sm:$0xff]
  %v119 = vld [vmem:[%s1 + $0x188] sm:$0xff]
  %v120 = vld [vmem:[%s1 + $0x190] sm:$0xff]
  %v121 = vld [vmem:[%s1 + $0x198] sm:$0xff]
  %v122 = vld [vmem:[%s1 + $0x1a0] sm:$0xff]
  %v123 = vld [vmem:[%s1 + $0x1a8] sm:$0xff]
  %v124 = vld [vmem:[%s1 + $0x1b0] sm:$0xff]
  %v125 = vld [vmem:[%s1 + $0x1b8] sm:$0xff]
  %v126 = vld [vmem:[%s1 + $0x1c0] sm:$0xff]
  %v127 = vld [vmem:[%s1 + $0x1c8] sm:$0xff]
  %v128 = vld [vmem:[%s1 + $0x1d0] sm:$0xff]
  %v129 = vld [vmem:[%s1 + $0x1d8] sm:$0xff]
  %v130 = vld [vmem:[%s1 + $0x1e0] sm:$0xff]
  %v131 = vld [vmem:[%s1 + $0x1e8] sm:$0xff]
  %v132 = vld [vmem:[%s1 + $0x1f0] sm:$0xff]
  %v133 = vld [vmem:[%s1 + $0x1f8] sm:$0xff]
  %v134 = vld [vmem:[%s2] sm:$0x3]
  %v136 = vperm.slane %v134, 0
  %v137 = vperm.slane %v134, 1
  %140 = vmatpush.msra.mxu0 %v100
  %141 = vmatpush.msra.mxu0 %v98
  %142 = vmatpush.msra.mxu0 %v96
  %143 = vmatpush.msra.mxu0 %v94
  %144 = vmatpush.msra.mxu0 %v92
  %145 = vmatpush.msra.mxu0 %v90
  %146 = vmatpush.msra.mxu0 %v88
  %147 = vmatpush.msra.mxu0 %v86
  %148 = vmatpush.msra.mxu0 %v84
  %149 = vmatpush.msra.mxu0 %v82
  %150 = vmatpush.msra.mxu0 %v80
  %151 = vmatpush.msra.mxu0 %v78
  %152 = vmatpush.msra.mxu0 %v76
  %153 = vmatpush.msra.mxu0 %v74
  %154 = vmatpush.msra.mxu0 %v72
  %155 = vmatpush.msra.mxu0 %v70
  %156 = vmatmul.f32.gmra.mxu0 %v38
  %v157 = vpop.f32.mrf.mxu0
  %v158 = vadd.f32 %v136, %v157
  %159 = vmatmul.f32.gmra.mxu0 %v40
  %v160 = vpop.f32.mrf.mxu0
  %v161 = vadd.f32 %v136, %v160
  %162 = vmatmul.f32.gmra.mxu0 %v42
  %v163 = vpop.f32.mrf.mxu0
  %v164 = vadd.f32 %v136, %v163
  %165 = vmatmul.f32.gmra.mxu0 %v44
  %v166 = vpop.f32.mrf.mxu0
  %v167 = vadd.f32 %v136, %v166
  %168 = vmatmul.f32.gmra.mxu0 %v46
  %v169 = vpop.f32.mrf.mxu0
  %v170 = vadd.f32 %v136, %v169
  %171 = vmatmul.f32.gmra.mxu0 %v48
  %v172 = vpop.f32.mrf.mxu0
  %v173 = vadd.f32 %v136, %v172
  %174 = vmatmul.f32.gmra.mxu0 %v50
  %v175 = vpop.f32.mrf.mxu0
  %v176 = vadd.f32 %v136, %v175
  %177 = vmatmul.f32.gmra.mxu0 %v52
  %v178 = vpop.f32.mrf.mxu0
  %v179 = vadd.f32 %v136, %v178
  %180 = vmatmul.f32.gmra.mxu0 %v54
  %v181 = vpop.f32.mrf.mxu0
  %v182 = vadd.f32 %v136, %v181
  %183 = vmatmul.f32.gmra.mxu0 %v56
  %v184 = vpop.f32.mrf.mxu0
  %v185 = vadd.f32 %v136, %v184
  %186 = vmatmul.f32.gmra.mxu0 %v58
  %v187 = vpop.f32.mrf.mxu0
  %v188 = vadd.f32 %v136, %v187
  %189 = vmatmul.f32.gmra.mxu0 %v60
  %v190 = vpop.f32.mrf.mxu0
  %v191 = vadd.f32 %v136, %v190
  %192 = vmatmul.f32.gmra.mxu0 %v62
  %v193 = vpop.f32.mrf.mxu0
  %v194 = vadd.f32 %v136, %v193
  %195 = vmatmul.f32.gmra.mxu0 %v64
  %v196 = vpop.f32.mrf.mxu0
  %v197 = vadd.f32 %v136, %v196
  %198 = vmatmul.f32.gmra.mxu0 %v66
  %v199 = vpop.f32.mrf.mxu0
  %v200 = vadd.f32 %v136, %v199
  %201 = vmatmul.f32.gmra.mxu0 %v68
  %v202 = vpop.f32.mrf.mxu0
  %v203 = vadd.f32 %v136, %v202
  %204 = vdwg.mxu0
  %205 = vmatpush.msra.mxu0 %v132
  %206 = vmatpush.msra.mxu0 %v130
  %207 = vmatpush.msra.mxu0 %v128
  %208 = vmatpush.msra.mxu0 %v126
  %209 = vmatpush.msra.mxu0 %v124
  %210 = vmatpush.msra.mxu0 %v122
  %211 = vmatpush.msra.mxu0 %v120
  %212 = vmatpush.msra.mxu0 %v118
  %213 = vmatpush.msra.mxu0 %v116
  %214 = vmatpush.msra.mxu0 %v114
  %215 = vmatpush.msra.mxu0 %v112
  %216 = vmatpush.msra.mxu0 %v110
  %217 = vmatpush.msra.mxu0 %v108
  %218 = vmatpush.msra.mxu0 %v106
  %219 = vmatpush.msra.mxu0 %v104
  %220 = vmatpush.msra.mxu0 %v102
  %221 = vmatmul.f32.gmra.mxu0 %v39
  %v222 = vpop.f32.mrf.mxu0
  %v223 = vadd.f32 %v158, %v222
  %224 = vmatmul.f32.gmra.mxu0 %v41
  %v225 = vpop.f32.mrf.mxu0
  %v226 = vadd.f32 %v161, %v225
  %227 = vmatmul.f32.gmra.mxu0 %v43
  %v228 = vpop.f32.mrf.mxu0
  %v229 = vadd.f32 %v164, %v228
  %230 = vmatmul.f32.gmra.mxu0 %v45
  %v231 = vpop.f32.mrf.mxu0
  %v232 = vadd.f32 %v167, %v231
  %233 = vmatmul.f32.gmra.mxu0 %v47
  %v234 = vpop.f32.mrf.mxu0
  %v235 = vadd.f32 %v170, %v234
  %236 = vmatmul.f32.gmra.mxu0 %v49
  %v237 = vpop.f32.mrf.mxu0
  %v238 = vadd.f32 %v173, %v237
  %239 = vmatmul.f32.gmra.mxu0 %v51
  %v240 = vpop.f32.mrf.mxu0
  %v241 = vadd.f32 %v176, %v240
  %242 = vmatmul.f32.gmra.mxu0 %v53
  %v243 = vpop.f32.mrf.mxu0
  %v244 = vadd.f32 %v179, %v243
  %245 = vmatmul.f32.gmra.mxu0 %v55
  %v246 = vpop.f32.mrf.mxu0
  %v247 = vadd.f32 %v182, %v246
  %248 = vmatmul.f32.gmra.mxu0 %v57
  %v249 = vpop.f32.mrf.mxu0
  %v250 = vadd.f32 %v185, %v249
  %251 = vmatmul.f32.gmra.mxu0 %v59
  %v252 = vpop.f32.mrf.mxu0
  %v253 = vadd.f32 %v188, %v252
  %254 = vmatmul.f32.gmra.mxu0 %v61
  %v255 = vpop.f32.mrf.mxu0
  %v256 = vadd.f32 %v191, %v255
  %257 = vmatmul.f32.gmra.mxu0 %v63
  %v258 = vpop.f32.mrf.mxu0
  %v259 = vadd.f32 %v194, %v258
  %260 = vmatmul.f32.gmra.mxu0 %v65
  %v261 = vpop.f32.mrf.mxu0
  %v262 = vadd.f32 %v197, %v261
  %263 = vmatmul.f32.gmra.mxu0 %v67
  %v264 = vpop.f32.mrf.mxu0
  %v265 = vadd.f32 %v200, %v264
  %266 = vmatmul.f32.gmra.mxu0 %v69
  %v267 = vpop.f32.mrf.mxu0
  %v268 = vadd.f32 %v203, %v267
  %269 = vdwg.mxu0
  %270 = vmatpush.msra.mxu0 %v101
  %271 = vmatpush.msra.mxu0 %v99
  %272 = vmatpush.msra.mxu0 %v97
  %273 = vmatpush.msra.mxu0 %v95
  %274 = vmatpush.msra.mxu0 %v93
  %275 = vmatpush.msra.mxu0 %v91
  %276 = vmatpush.msra.mxu0 %v89
  %277 = vmatpush.msra.mxu0 %v87
  %278 = vmatpush.msra.mxu0 %v85
  %279 = vmatpush.msra.mxu0 %v83
  %280 = vmatpush.msra.mxu0 %v81
  %281 = vmatpush.msra.mxu0 %v79
  %282 = vmatpush.msra.mxu0 %v77
  %283 = vmatpush.msra.mxu0 %v75
  %284 = vmatpush.msra.mxu0 %v73
  %285 = vmatpush.msra.mxu0 %v71
  %286 = vmatmul.f32.gmra.mxu0 %v38
  %v287 = vpop.f32.mrf.mxu0
  %v288 = vadd.f32 %v137, %v287
  %289 = vmatmul.f32.gmra.mxu0 %v40
  %v290 = vpop.f32.mrf.mxu0
  %v291 = vadd.f32 %v137, %v290
  %292 = vmatmul.f32.gmra.mxu0 %v42
  %v293 = vpop.f32.mrf.mxu0
  %v294 = vadd.f32 %v137, %v293
  %295 = vmatmul.f32.gmra.mxu0 %v44
  %v296 = vpop.f32.mrf.mxu0
  %v297 = vadd.f32 %v137, %v296
  %298 = vmatmul.f32.gmra.mxu0 %v46
  %v299 = vpop.f32.mrf.mxu0
  %v300 = vadd.f32 %v137, %v299
  %301 = vmatmul.f32.gmra.mxu0 %v48
  %v302 = vpop.f32.mrf.mxu0
  %v303 = vadd.f32 %v137, %v302
  %304 = vmatmul.f32.gmra.mxu0 %v50
  %v305 = vpop.f32.mrf.mxu0
  %v306 = vadd.f32 %v137, %v305
  %307 = vmatmul.f32.gmra.mxu0 %v52
  %v308 = vpop.f32.mrf.mxu0
  %v309 = vadd.f32 %v137, %v308
  %310 = vmatmul.f32.gmra.mxu0 %v54
  %v311 = vpop.f32.mrf.mxu0
  %v312 = vadd.f32 %v137, %v311
  %313 = vmatmul.f32.gmra.mxu0 %v56
  %v314 = vpop.f32.mrf.mxu0
  %v315 = vadd.f32 %v137, %v314
  %316 = vmatmul.f32.gmra.mxu0 %v58
  %v317 = vpop.f32.mrf.mxu0
  %v318 = vadd.f32 %v137, %v317
  %319 = vmatmul.f32.gmra.mxu0 %v60
  %v320 = vpop.f32.mrf.mxu0
  %v321 = vadd.f32 %v137, %v320
  %322 = vmatmul.f32.gmra.mxu0 %v62
  %v323 = vpop.f32.mrf.mxu0
  %v324 = vadd.f32 %v137, %v323
  %325 = vmatmul.f32.gmra.mxu0 %v64
  %v326 = vpop.f32.mrf.mxu0
  %v327 = vadd.f32 %v137, %v326
  %328 = vmatmul.f32.gmra.mxu0 %v66
  %v329 = vpop.f32.mrf.mxu0
  %v330 = vadd.f32 %v137, %v329
  %331 = vmatmul.f32.gmra.mxu0 %v68
  %v332 = vpop.f32.mrf.mxu0
  %v333 = vadd.f32 %v137, %v332
  %334 = vdwg.mxu0
  %335 = vmatpush.msra.mxu0 %v133
  %336 = vmatpush.msra.mxu0 %v131
  %337 = vmatpush.msra.mxu0 %v129
  %338 = vmatpush.msra.mxu0 %v127
  %339 = vmatpush.msra.mxu0 %v125
  %340 = vmatpush.msra.mxu0 %v123
  %341 = vmatpush.msra.mxu0 %v121
  %342 = vmatpush.msra.mxu0 %v119
  %343 = vmatpush.msra.mxu0 %v117
  %344 = vmatpush.msra.mxu0 %v115
  %345 = vmatpush.msra.mxu0 %v113
  %346 = vmatpush.msra.mxu0 %v111
  %347 = vmatpush.msra.mxu0 %v109
  %348 = vmatpush.msra.mxu0 %v107
  %349 = vmatpush.msra.mxu0 %v105
  %350 = vmatpush.msra.mxu0 %v103
  %351 = vmatmul.f32.gmra.mxu0 %v39
  %v352 = vpop.f32.mrf.mxu0
  %v353 = vadd.f32 %v288, %v352
  %354 = vmatmul.f32.gmra.mxu0 %v41
  %v355 = vpop.f32.mrf.mxu0
  %v356 = vadd.f32 %v291, %v355
  %357 = vmatmul.f32.gmra.mxu0 %v43
  %v358 = vpop.f32.mrf.mxu0
  %v359 = vadd.f32 %v294, %v358
  %360 = vmatmul.f32.gmra.mxu0 %v45
  %v361 = vpop.f32.mrf.mxu0
  %v362 = vadd.f32 %v297, %v361
  %363 = vmatmul.f32.gmra.mxu0 %v47
  %v364 = vpop.f32.mrf.mxu0
  %v365 = vadd.f32 %v300, %v364
  %366 = vmatmul.f32.gmra.mxu0 %v49
  %v367 = vpop.f32.mrf.mxu0
  %v368 = vadd.f32 %v303, %v367
  %369 = vmatmul.f32.gmra.mxu0 %v51
  %v370 = vpop.f32.mrf.mxu0
  %v371 = vadd.f32 %v306, %v370
  %372 = vmatmul.f32.gmra.mxu0 %v53
  %v373 = vpop.f32.mrf.mxu0
  %v374 = vadd.f32 %v309, %v373
  %375 = vmatmul.f32.gmra.mxu0 %v55
  %v376 = vpop.f32.mrf.mxu0
  %v377 = vadd.f32 %v312, %v376
  %378 = vmatmul.f32.gmra.mxu0 %v57
  %v379 = vpop.f32.mrf.mxu0
  %v380 = vadd.f32 %v315, %v379
  %381 = vmatmul.f32.gmra.mxu0 %v59
  %v382 = vpop.f32.mrf.mxu0
  %v383 = vadd.f32 %v318, %v382
  %384 = vmatmul.f32.gmra.mxu0 %v61
  %v385 = vpop.f32.mrf.mxu0
  %v386 = vadd.f32 %v321, %v385
  %387 = vmatmul.f32.gmra.mxu0 %v63
  %v388 = vpop.f32.mrf.mxu0
  %v389 = vadd.f32 %v324, %v388
  %390 = vmatmul.f32.gmra.mxu0 %v65
  %v391 = vpop.f32.mrf.mxu0
  %v392 = vadd.f32 %v327, %v391
  %393 = vmatmul.f32.gmra.mxu0 %v67
  %v394 = vpop.f32.mrf.mxu0
  %v395 = vadd.f32 %v330, %v394
  %396 = vmatmul.f32.gmra.mxu0 %v69
  %v397 = vpop.f32.mrf.mxu0
  %v398 = vadd.f32 %v333, %v397
  %399 = vdwg.mxu0
  %v400 = vmax.f32 %v223, 0.0
  %v401 = vmax.f32 %v353, 0.0
  %v402 = vmax.f32 %v226, 0.0
  %v403 = vmax.f32 %v356, 0.0
  %v404 = vmax.f32 %v229, 0.0
  %v405 = vmax.f32 %v359, 0.0
  %v406 = vmax.f32 %v232, 0.0
  %v407 = vmax.f32 %v362, 0.0
  %v408 = vmax.f32 %v235, 0.0
  %v409 = vmax.f32 %v365, 0.0
  %v410 = vmax.f32 %v238, 0.0
  %v411 = vmax.f32 %v368, 0.0
  %v412 = vmax.f32 %v241, 0.0
  %v413 = vmax.f32 %v371, 0.0
  %v414 = vmax.f32 %v244, 0.0
  %v415 = vmax.f32 %v374, 0.0
  %v416 = vmax.f32 %v247, 0.0
  %v417 = vmax.f32 %v377, 0.0
  %v418 = vmax.f32 %v250, 0.0
  %v419 = vmax.f32 %v380, 0.0
  %v420 = vmax.f32 %v253, 0.0
  %v421 = vmax.f32 %v383, 0.0
  %v422 = vmax.f32 %v256, 0.0
  %v423 = vmax.f32 %v386, 0.0
  %v424 = vmax.f32 %v259, 0.0
  %v425 = vmax.f32 %v389, 0.0
  %v426 = vmax.f32 %v262, 0.0
  %v427 = vmax.f32 %v392, 0.0
  %v428 = vmax.f32 %v265, 0.0
  %v429 = vmax.f32 %v395, 0.0
  %v430 = vmax.f32 %v268, 0.0
  %v431 = vmax.f32 %v398, 0.0
  %v432 = vld [vmem:[%s3] sm:$0xff]
  %v433 = vld [vmem:[%s3 + $0x8] sm:$0xff]
  %v434 = vld [vmem:[%s3 + $0x10] sm:$0xff]
  %v435 = vld [vmem:[%s3 + $0x18] sm:$0xff]
  %v436 = vld [vmem:[%s3 + $0x20] sm:$0xff]
  %v437 = vld [vmem:[%s3 + $0x28] sm:$0xff]
  %v438 = vld [vmem:[%s3 + $0x30] sm:$0xff]
  %v439 = vld [vmem:[%s3 + $0x38] sm:$0xff]
  %v440 = vld [vmem:[%s3 + $0x40] sm:$0xff]
  %v441 = vld [vmem:[%s3 + $0x48] sm:$0xff]
  %v442 = vld [vmem:[%s3 + $0x50] sm:$0xff]
  %v443 = vld [vmem:[%s3 + $0x58] sm:$0xff]
  %v444 = vld [vmem:[%s3 + $0x60] sm:$0xff]
  %v445 = vld [vmem:[%s3 + $0x68] sm:$0xff]
  %v446 = vld [vmem:[%s3 + $0x70] sm:$0xff]
  %v447 = vld [vmem:[%s3 + $0x78] sm:$0xff]
  %v448 = vld [vmem:[%s3 + $0x80] sm:$0xff]
  %v449 = vld [vmem:[%s3 + $0x88] sm:$0xff]
  %v450 = vld [vmem:[%s3 + $0x90] sm:$0xff]
  %v451 = vld [vmem:[%s3 + $0x98] sm:$0xff]
  %v452 = vld [vmem:[%s3 + $0xa0] sm:$0xff]
  %v453 = vld [vmem:[%s3 + $0xa8] sm:$0xff]
  %v454 = vld [vmem:[%s3 + $0xb0] sm:$0xff]
  %v455 = vld [vmem:[%s3 + $0xb8] sm:$0xff]
  %v456 = vld [vmem:[%s3 + $0xc0] sm:$0xff]
  %v457 = vld [vmem:[%s3 + $0xc8] sm:$0xff]
  %v458 = vld [vmem:[%s3 + $0xd0] sm:$0xff]
  %v459 = vld [vmem:[%s3 + $0xd8] sm:$0xff]
  %v460 = vld [vmem:[%s3 + $0xe0] sm:$0xff]
  %v461 = vld [vmem:[%s3 + $0xe8] sm:$0xff]
  %v462 = vld [vmem:[%s3 + $0xf0] sm:$0xff]
  %v463 = vld [vmem:[%s3 + $0xf8] sm:$0xff]
  %v464 = vld [vmem:[%s4] sm:$0x1]
  %v466 = vperm.slane %v464, 0
  %468 = vmatpush.msra.mxu0 %v447
  %469 = vmatpush.msra.mxu0 %v446
  %470 = vmatpush.msra.mxu0 %v445
  %471 = vmatpush.msra.mxu0 %v444
  %472 = vmatpush.msra.mxu0 %v443
  %473 = vmatpush.msra.mxu0 %v442
  %474 = vmatpush.msra.mxu0 %v441
  %475 = vmatpush.msra.mxu0 %v440
  %476 = vmatpush.msra.mxu0 %v439
  %477 = vmatpush.msra.mxu0 %v438
  %478 = vmatpush.msra.mxu0 %v437
  %479 = vmatpush.msra.mxu0 %v436
  %480 = vmatpush.msra.mxu0 %v435
  %481 = vmatpush.msra.mxu0 %v434
  %482 = vmatpush.msra.mxu0 %v433
  %483 = vmatpush.msra.mxu0 %v432
  %484 = vmatmul.f32.gmra.mxu0 %v400
  %v485 = vpop.f32.mrf.mxu0
  %v486 = vadd.f32 %v466, %v485
  %487 = vmatmul.f32.gmra.mxu0 %v402
  %v488 = vpop.f32.mrf.mxu0
  %v489 = vadd.f32 %v466, %v488
  %490 = vmatmul.f32.gmra.mxu0 %v404
  %v491 = vpop.f32.mrf.mxu0
  %v492 = vadd.f32 %v466, %v491
  %493 = vmatmul.f32.gmra.mxu0 %v406
  %v494 = vpop.f32.mrf.mxu0
  %v495 = vadd.f32 %v466, %v494
  %496 = vmatmul.f32.gmra.mxu0 %v408
  %v497 = vpop.f32.mrf.mxu0
  %v498 = vadd.f32 %v466, %v497
  %499 = vmatmul.f32.gmra.mxu0 %v410
  %v500 = vpop.f32.mrf.mxu0
  %v501 = vadd.f32 %v466, %v500
  %502 = vmatmul.f32.gmra.mxu0 %v412
  %v503 = vpop.f32.mrf.mxu0
  %v504 = vadd.f32 %v466, %v503
  %505 = vmatmul.f32.gmra.mxu0 %v414
  %v506 = vpop.f32.mrf.mxu0
  %v507 = vadd.f32 %v466, %v506
  %508 = vmatmul.f32.gmra.mxu0 %v416
  %v509 = vpop.f32.mrf.mxu0
  %v510 = vadd.f32 %v466, %v509
  %511 = vmatmul.f32.gmra.mxu0 %v418
  %v512 = vpop.f32.mrf.mxu0
  %v513 = vadd.f32 %v466, %v512
  %514 = vmatmul.f32.gmra.mxu0 %v420
  %v515 = vpop.f32.mrf.mxu0
  %v516 = vadd.f32 %v466, %v515
  %517 = vmatmul.f32.gmra.mxu0 %v422
  %v518 = vpop.f32.mrf.mxu0
  %v519 = vadd.f32 %v466, %v518
  %520 = vmatmul.f32.gmra.mxu0 %v424
  %v521 = vpop.f32.mrf.mxu0
  %v522 = vadd.f32 %v466, %v521
  %523 = vmatmul.f32.gmra.mxu0 %v426
  %v524 = vpop.f32.mrf.mxu0
  %v525 = vadd.f32 %v466, %v524
  %526 = vmatmul.f32.gmra.mxu0 %v428
  %v527 = vpop.f32.mrf.mxu0
  %v528 = vadd.f32 %v466, %v527
  %529 = vmatmul.f32.gmra.mxu0 %v430
  %v530 = vpop.f32.mrf.mxu0
  %v531 = vadd.f32 %v466, %v530
  %532 = vdwg.mxu0
  %533 = vmatpush.msra.mxu0 %v463
  %534 = vmatpush.msra.mxu0 %v462
  %535 = vmatpush.msra.mxu0 %v461
  %536 = vmatpush.msra.mxu0 %v460
  %537 = vmatpush.msra.mxu0 %v459
  %538 = vmatpush.msra.mxu0 %v458
  %539 = vmatpush.msra.mxu0 %v457
  %540 = vmatpush.msra.mxu0 %v456
  %541 = vmatpush.msra.mxu0 %v455
  %542 = vmatpush.msra.mxu0 %v454
  %543 = vmatpush.msra.mxu0 %v453
  %544 = vmatpush.msra.mxu0 %v452
  %545 = vmatpush.msra.mxu0 %v451
  %546 = vmatpush.msra.mxu0 %v450
  %547 = vmatpush.msra.mxu0 %v449
  %548 = vmatpush.msra.mxu0 %v448
  %549 = vmatmul.f32.gmra.mxu0 %v401
  %v550 = vpop.f32.mrf.mxu0
  %v551 = vadd.f32 %v486, %v550
  %552 = vmatmul.f32.gmra.mxu0 %v403
  %v553 = vpop.f32.mrf.mxu0
  %v554 = vadd.f32 %v489, %v553
  %555 = vmatmul.f32.gmra.mxu0 %v405
  %v556 = vpop.f32.mrf.mxu0
  %v557 = vadd.f32 %v492, %v556
  %558 = vmatmul.f32.gmra.mxu0 %v407
  %v559 = vpop.f32.mrf.mxu0
  %v560 = vadd.f32 %v495, %v559
  %561 = vmatmul.f32.gmra.mxu0 %v409
  %v562 = vpop.f32.mrf.mxu0
  %v563 = vadd.f32 %v498, %v562
  %564 = vmatmul.f32.gmra.mxu0 %v411
  %v565 = vpop.f32.mrf.mxu0
  %v566 = vadd.f32 %v501, %v565
  %567 = vmatmul.f32.gmra.mxu0 %v413
  %v568 = vpop.f32.mrf.mxu0
  %v569 = vadd.f32 %v504, %v568
  %570 = vmatmul.f32.gmra.mxu0 %v415
  %v571 = vpop.f32.mrf.mxu0
  %v572 = vadd.f32 %v507, %v571
  %573 = vmatmul.f32.gmra.mxu0 %v417
  %v574 = vpop.f32.mrf.mxu0
  %v575 = vadd.f32 %v510, %v574
  %576 = vmatmul.f32.gmra.mxu0 %v419
  %v577 = vpop.f32.mrf.mxu0
  %v578 = vadd.f32 %v513, %v577
  %579 = vmatmul.f32.gmra.mxu0 %v421
  %v580 = vpop.f32.mrf.mxu0
  %v581 = vadd.f32 %v516, %v580
  %582 = vmatmul.f32.gmra.mxu0 %v423
  %v583 = vpop.f32.mrf.mxu0
  %v584 = vadd.f32 %v519, %v583
  %585 = vmatmul.f32.gmra.mxu0 %v425
  %v586 = vpop.f32.mrf.mxu0
  %v587 = vadd.f32 %v522, %v586
  %588 = vmatmul.f32.gmra.mxu0 %v427
  %v589 = vpop.f32.mrf.mxu0
  %v590 = vadd.f32 %v525, %v589
  %591 = vmatmul.f32.gmra.mxu0 %v429
  %v592 = vpop.f32.mrf.mxu0
  %v593 = vadd.f32 %v528, %v592
  %594 = vmatmul.f32.gmra.mxu0 %v431
  %v595 = vpop.f32.mrf.mxu0
  %v596 = vadd.f32 %v531, %v595
  %597 = vdwg.mxu0
  %v598 = vmax.f32 %v551, 0.0
  %v599 = vmax.f32 %v554, 0.0
  %v600 = vmax.f32 %v557, 0.0
  %v601 = vmax.f32 %v560, 0.0
  %v602 = vmax.f32 %v563, 0.0
  %v603 = vmax.f32 %v566, 0.0
  %v604 = vmax.f32 %v569, 0.0
  %v605 = vmax.f32 %v572, 0.0
  %v606 = vmax.f32 %v575, 0.0
  %v607 = vmax.f32 %v578, 0.0
  %v608 = vmax.f32 %v581, 0.0
  %v609 = vmax.f32 %v584, 0.0
  %v610 = vmax.f32 %v587, 0.0
  %v611 = vmax.f32 %v590, 0.0
  %v612 = vmax.f32 %v593, 0.0
  %v613 = vmax.f32 %v596, 0.0
  %v614 = vld [vmem:[%s5] sm:$0xff]
  %v615 = vld [vmem:[%s5 + $0x8] sm:$0xff]
  %v616 = vld [vmem:[%s5 + $0x10] sm:$0xff]
  %v617 = vld [vmem:[%s5 + $0x18] sm:$0xff]
  %v618 = vld [vmem:[%s5 + $0x20] sm:$0xff]
  %v619 = vld [vmem:[%s5 + $0x28] sm:$0xff]
  %v620 = vld [vmem:[%s5 + $0x30] sm:$0xff]
  %v621 = vld [vmem:[%s5 + $0x38] sm:$0xff]
  %v622 = vld [vmem:[%s6] sm:$0x1]
  %v624 = vperm.slane %v622, 0
  %vm626 = vcmask 523264
  %v628 = vsel %vm626, %v598, 0
  %v631 = vsel %vm626, %v599, 0
  %v634 = vsel %vm626, %v600, 0
  %v637 = vsel %vm626, %v601, 0
  %v640 = vsel %vm626, %v602, 0
  %v643 = vsel %vm626, %v603, 0
  %v646 = vsel %vm626, %v604, 0
  %v649 = vsel %vm626, %v605, 0
  %v652 = vsel %vm626, %v606, 0
  %v655 = vsel %vm626, %v607, 0
  %v658 = vsel %vm626, %v608, 0
  %v661 = vsel %vm626, %v609, 0
  %v664 = vsel %vm626, %v610, 0
  %v667 = vsel %vm626, %v611, 0
  %v670 = vsel %vm626, %v612, 0
  %v673 = vsel %vm626, %v613, 0
  %675 = vmatpush.msra.mxu0 0.0
  %676 = vmatpush.msra.mxu0 0.0
  %677 = vmatpush.msra.mxu0 0.0
  %678 = vmatpush.msra.mxu0 0.0
  %679 = vmatpush.msra.mxu0 0.0
  %680 = vmatpush.msra.mxu0 0.0
  %681 = vmatpush.msra.mxu0 0.0
  %682 = vmatpush.msra.mxu0 0.0
  %683 = vmatpush.msra.mxu0 %v621
  %684 = vmatpush.msra.mxu0 %v620
  %685 = vmatpush.msra.mxu0 %v619
  %686 = vmatpush.msra.mxu0 %v618
  %687 = vmatpush.msra.mxu0 %v617
  %688 = vmatpush.msra.mxu0 %v616
  %689 = vmatpush.msra.mxu0 %v615
  %690 = vmatpush.msra.mxu0 %v614
  %691 = vmatmul.f32.gmra.mxu0 %v628
  %v692 = vpop.f32.mrf.mxu0
  %v693 = vadd.f32 %v624, %v692
  %694 = vmatmul.f32.gmra.mxu0 %v631
  %v695 = vpop.f32.mrf.mxu0
  %v696 = vadd.f32 %v624, %v695
  %697 = vmatmul.f32.gmra.mxu0 %v634
  %v698 = vpop.f32.mrf.mxu0
  %v699 = vadd.f32 %v624, %v698
  %700 = vmatmul.f32.gmra.mxu0 %v637
  %v701 = vpop.f32.mrf.mxu0
  %v702 = vadd.f32 %v624, %v701
  %703 = vmatmul.f32.gmra.mxu0 %v640
  %v704 = vpop.f32.mrf.mxu0
  %v705 = vadd.f32 %v624, %v704
  %706 = vmatmul.f32.gmra.mxu0 %v643
  %v707 = vpop.f32.mrf.mxu0
  %v708 = vadd.f32 %v624, %v707
  %709 = vmatmul.f32.gmra.mxu0 %v646
  %v710 = vpop.f32.mrf.mxu0
  %v711 = vadd.f32 %v624, %v710
  %712 = vmatmul.f32.gmra.mxu0 %v649
  %v713 = vpop.f32.mrf.mxu0
  %v714 = vadd.f32 %v624, %v713
  %715 = vmatmul.f32.gmra.mxu0 %v652
  %v716 = vpop.f32.mrf.mxu0
  %v717 = vadd.f32 %v624, %v716
  %718 = vmatmul.f32.gmra.mxu0 %v655
  %v719 = vpop.f32.mrf.mxu0
  %v720 = vadd.f32 %v624, %v719
  %721 = vmatmul.f32.gmra.mxu0 %v658
  %v722 = vpop.f32.mrf.mxu0
  %v723 = vadd.f32 %v624, %v722
  %724 = vmatmul.f32.gmra.mxu0 %v661
  %v725 = vpop.f32.mrf.mxu0
  %v726 = vadd.f32 %v624, %v725
  %727 = vmatmul.f32.gmra.mxu0 %v664
  %v728 = vpop.f32.mrf.mxu0
  %v729 = vadd.f32 %v624, %v728
  %730 = vmatmul.f32.gmra.mxu0 %v667
  %v731 = vpop.f32.mrf.mxu0
  %v732 = vadd.f32 %v624, %v731
  %733 = vmatmul.f32.gmra.mxu0 %v670
  %v734 = vpop.f32.mrf.mxu0
  %v735 = vadd.f32 %v624, %v734
  %736 = vmatmul.f32.gmra.mxu0 %v673
  %v737 = vpop.f32.mrf.mxu0
  %v738 = vadd.f32 %v624, %v737
  %739 = vdwg.mxu0
  %v740 = vmax.f32 %v693, 0.0
  %v741 = vmax.f32 %v696, 0.0
  %v742 = vmax.f32 %v699, 0.0
  %v743 = vmax.f32 %v702, 0.0
  %v744 = vmax.f32 %v705, 0.0
  %v745 = vmax.f32 %v708, 0.0
  %v746 = vmax.f32 %v711, 0.0
  %v747 = vmax.f32 %v714, 0.0
  %v748 = vmax.f32 %v717, 0.0
  %v749 = vmax.f32 %v720, 0.0
  %v750 = vmax.f32 %v723, 0.0
  %v751 = vmax.f32 %v726, 0.0
  %v752 = vmax.f32 %v729, 0.0
  %v753 = vmax.f32 %v732, 0.0
  %v754 = vmax.f32 %v735, 0.0
  %v755 = vmax.f32 %v738, 0.0
  %757 = vrot.lane.b32.xlu0 %v741, 16
  %v758 = vpop.permute.xlu0 %757
  %761 = vrot.lane.b32.xlu0 %v742, 32
  %v762 = vpop.permute.xlu0 %761
  %765 = vrot.lane.b32.xlu0 %v743, 48
  %v766 = vpop.permute.xlu0 %765
  %769 = vrot.lane.b32.xlu0 %v744, 64
  %v770 = vpop.permute.xlu0 %769
  %773 = vrot.lane.b32.xlu0 %v745, 80
  %v774 = vpop.permute.xlu0 %773
  %777 = vrot.lane.b32.xlu0 %v746, 96
  %v778 = vpop.permute.xlu0 %777
  %781 = vrot.lane.b32.xlu0 %v747, 112
  %v782 = vpop.permute.xlu0 %781
  %785 = vrot.lane.b32.xlu0 %v749, 16
  %v786 = vpop.permute.xlu0 %785
  %789 = vrot.lane.b32.xlu0 %v750, 32
  %v790 = vpop.permute.xlu0 %789
  %793 = vrot.lane.b32.xlu0 %v751, 48
  %v794 = vpop.permute.xlu0 %793
  %797 = vrot.lane.b32.xlu0 %v752, 64
  %v798 = vpop.permute.xlu0 %797
  %801 = vrot.lane.b32.xlu0 %v753, 80
  %v802 = vpop.permute.xlu0 %801
  %805 = vrot.lane.b32.xlu0 %v754, 96
  %v806 = vpop.permute.xlu0 %805
  %809 = vrot.lane.b32.xlu0 %v755, 112
  %v810 = vpop.permute.xlu0 %809
  %vm812 = vcmask 130048
  %v813 = vsel %vm812, %v740, %v758
  %vm814 = vcmask 261120
  %v815 = vsel %vm814, %v813, %v762
  %vm816 = vcmask 392192
  %v817 = vsel %vm816, %v815, %v766
  %v818 = vsel %vm626, %v817, %v770
  %vm819 = vcmask 654336
  %v820 = vsel %vm819, %v818, %v774
  %vm821 = vcmask 785408
  %v822 = vsel %vm821, %v820, %v778
  %vm823 = vcmask 916480
  %v824 = vsel %vm823, %v822, %v782
  %v825 = vsel %vm812, %v748, %v786
  %v826 = vsel %vm814, %v825, %v790
  %v827 = vsel %vm816, %v826, %v794
  %v828 = vsel %vm626, %v827, %v798
  %v829 = vsel %vm819, %v828, %v802
  %v830 = vsel %vm821, %v829, %v806
  %v831 = vsel %vm823, %v830, %v810
  %v832 = vld [vmem:[%s7] sm:$0xff]
  %v833 = vld [vmem:[%s7 + $0x8] sm:$0xff]
  %v834 = vld [vmem:[%s7 + $0x10] sm:$0xff]
  %v835 = vld [vmem:[%s7 + $0x18] sm:$0xff]
  %v836 = vld [vmem:[%s7 + $0x20] sm:$0xff]
  %v837 = vld [vmem:[%s7 + $0x28] sm:$0xff]
  %v838 = vld [vmem:[%s7 + $0x30] sm:$0xff]
  %v839 = vld [vmem:[%s7 + $0x38] sm:$0xff]
  %v840 = vld [vmem:[%s7 + $0x40] sm:$0xff]
  %v841 = vld [vmem:[%s7 + $0x48] sm:$0xff]
  %v842 = vld [vmem:[%s7 + $0x50] sm:$0xff]
  %v843 = vld [vmem:[%s7 + $0x58] sm:$0xff]
  %v844 = vld [vmem:[%s7 + $0x60] sm:$0xff]
  %v845 = vld [vmem:[%s7 + $0x68] sm:$0xff]
  %v846 = vld [vmem:[%s7 + $0x70] sm:$0xff]
  %v847 = vld [vmem:[%s7 + $0x78] sm:$0xff]
  %v848 = vld [vmem:[%s7 + $0x80] sm:$0xff]
  %v849 = vld [vmem:[%s7 + $0x88] sm:$0xff]
  %v850 = vld [vmem:[%s7 + $0x90] sm:$0xff]
  %v851 = vld [vmem:[%s7 + $0x98] sm:$0xff]
  %v852 = vld [vmem:[%s7 + $0xa0] sm:$0xff]
  %v853 = vld [vmem:[%s7 + $0xa8] sm:$0xff]
  %v854 = vld [vmem:[%s7 + $0xb0] sm:$0xff]
  %v855 = vld [vmem:[%s7 + $0xb8] sm:$0xff]
  %v856 = vld [vmem:[%s7 + $0xc0] sm:$0xff]
  %v857 = vld [vmem:[%s7 + $0xc8] sm:$0xff]
  %v858 = vld [vmem:[%s7 + $0xd0] sm:$0xff]
  %v859 = vld [vmem:[%s7 + $0xd8] sm:$0xff]
  %v860 = vld [vmem:[%s7 + $0xe0] sm:$0xff]
  %v861 = vld [vmem:[%s7 + $0xe8] sm:$0xff]
  %v862 = vld [vmem:[%s7 + $0xf0] sm:$0xff]
  %v863 = vld [vmem:[%s7 + $0xf8] sm:$0xff]
  %v864 = vld [vmem:[%s8] sm:$0x1]
  %v866 = vperm.slane %v864, 0
  %868 = vmatpush.msra.mxu0 %v847
  %869 = vmatpush.msra.mxu0 %v846
  %870 = vmatpush.msra.mxu0 %v845
  %871 = vmatpush.msra.mxu0 %v844
  %872 = vmatpush.msra.mxu0 %v843
  %873 = vmatpush.msra.mxu0 %v842
  %874 = vmatpush.msra.mxu0 %v841
  %875 = vmatpush.msra.mxu0 %v840
  %876 = vmatpush.msra.mxu0 %v839
  %877 = vmatpush.msra.mxu0 %v838
  %878 = vmatpush.msra.mxu0 %v837
  %879 = vmatpush.msra.mxu0 %v836
  %880 = vmatpush.msra.mxu0 %v835
  %881 = vmatpush.msra.mxu0 %v834
  %882 = vmatpush.msra.mxu0 %v833
  %883 = vmatpush.msra.mxu0 %v832
  %884 = vmatmul.f32.gmra.mxu0 %v824
  %v885 = vpop.f32.mrf.mxu0
  %v886 = vadd.f32 %v866, %v885
  %887 = vdwg.mxu0
  %888 = vmatpush.msra.mxu0 %v863
  %889 = vmatpush.msra.mxu0 %v862
  %890 = vmatpush.msra.mxu0 %v861
  %891 = vmatpush.msra.mxu0 %v860
  %892 = vmatpush.msra.mxu0 %v859
  %893 = vmatpush.msra.mxu0 %v858
  %894 = vmatpush.msra.mxu0 %v857
  %895 = vmatpush.msra.mxu0 %v856
  %896 = vmatpush.msra.mxu0 %v855
  %897 = vmatpush.msra.mxu0 %v854
  %898 = vmatpush.msra.mxu0 %v853
  %899 = vmatpush.msra.mxu0 %v852
  %900 = vmatpush.msra.mxu0 %v851
  %901 = vmatpush.msra.mxu0 %v850
  %902 = vmatpush.msra.mxu0 %v849
  %903 = vmatpush.msra.mxu0 %v848
  %904 = vmatmul.f32.gmra.mxu0 %v831
  %v905 = vpop.f32.mrf.mxu0
  %v906 = vadd.f32 %v886, %v905
  %907 = vdwg.mxu0
  %v908 = vmax.f32 %v906, 0.0
  %v909 = vld [vmem:[%s9] sm:$0xff]
  %v910 = vld [vmem:[%s9 + $0x8] sm:$0xff]
  %v911 = vld [vmem:[%s9 + $0x10] sm:$0xff]
  %v912 = vld [vmem:[%s9 + $0x18] sm:$0xff]
  %v913 = vld [vmem:[%s9 + $0x20] sm:$0xff]
  %v914 = vld [vmem:[%s9 + $0x28] sm:$0xff]
  %v915 = vld [vmem:[%s9 + $0x30] sm:$0xff]
  %v916 = vld [vmem:[%s9 + $0x38] sm:$0xff]
  %v917 = vld [vmem:[%s9 + $0x40] sm:$0xff]
  %v918 = vld [vmem:[%s9 + $0x48] sm:$0xff]
  %v919 = vld [vmem:[%s9 + $0x50] sm:$0xff]
  %v920 = vld [vmem:[%s9 + $0x58] sm:$0xff]
  %v921 = vld [vmem:[%s9 + $0x60] sm:$0xff]
  %v922 = vld [vmem:[%s9 + $0x68] sm:$0xff]
  %v923 = vld [vmem:[%s9 + $0x70] sm:$0xff]
  %v924 = vld [vmem:[%s9 + $0x78] sm:$0xff]
  %v925 = vld [vmem:[%s10] sm:$0x1]
  %v927 = vperm.slane %v925, 0
  %929 = vmatpush.msra.mxu0 %v924
  %930 = vmatpush.msra.mxu0 %v923
  %931 = vmatpush.msra.mxu0 %v922
  %932 = vmatpush.msra.mxu0 %v921
  %933 = vmatpush.msra.mxu0 %v920
  %934 = vmatpush.msra.mxu0 %v919
  %935 = vmatpush.msra.mxu0 %v918
  %936 = vmatpush.msra.mxu0 %v917
  %937 = vmatpush.msra.mxu0 %v916
  %938 = vmatpush.msra.mxu0 %v915
  %939 = vmatpush.msra.mxu0 %v914
  %940 = vmatpush.msra.mxu0 %v913
  %941 = vmatpush.msra.mxu0 %v912
  %942 = vmatpush.msra.mxu0 %v911
  %943 = vmatpush.msra.mxu0 %v910
  %944 = vmatpush.msra.mxu0 %v909
  %945 = vmatmul.f32.gmra.mxu0 %v908
  %v946 = vpop.f32.mrf.mxu0
  %v947 = vadd.f32 %v927, %v946
  %948 = vdwg.mxu0
  %vm949 = vcmask 31744
  %950 = vst.msk [vmem:[%s11] sm:$0xff] %vm949, %v947
  // Predicated region
  $region46: #{conv_dqn_sokoban_forward.1} parent=0 // pred_check
    _
  $region47: #{conv_dqn_sokoban_forward.1} parent=0 // pred_check_branch
    %952 = sbr.rel (0) target = $region49
  $region48: #{conv_dqn_sokoban_forward.1} parent=0 // pred_region
    _
  $region49: #{conv_dqn_sokoban_forward.1} parent=0 // pred_fallthru
    _
  // Predicated region
  $region50: #{conv_dqn_sokoban_forward.1} parent=0 // pred_check
    _
  $region51: #{conv_dqn_sokoban_forward.1} parent=0 // pred_check_branch
    %954 = sbr.rel (0) target = $region53
  $region52: #{conv_dqn_sokoban_forward.1} parent=0 // pred_region
    _
  $region53: #{conv_dqn_sokoban_forward.1} parent=0 // pred_fallthru
    _

</llo_original>
